<compile_context>
chip_gen: v6e
topology: v6e:2x2x1
jax: 0.10.0
libtpu: 0.0.40
codegen_flags: <defaults>
</compile_context>

<pallas_src>
import functools

import jax
import jax.numpy as jnp
from jax.experimental import pallas as pl
from jax.experimental.pallas import tpu as pltpu


def _round_up(x: int, m: int) -> int:
    return (x + m - 1) // m * m


def _cross_attn_kernel(cls_ref, x1_ref, x2_ref,
                       wq_ref, wk_ref, wv_ref, wo_ref,
                       bq_ref, bk_ref, bv_ref, bo_ref,
                       gamma_ref, beta_ref, hsum_blk_ref, hexp_blk_ref,
                       o_ref,
                       x_sc, q_sc, ctx_sc, kcat_sc, vcat_sc,
                       *, nhead: int, n_x1: int, first: bool, eps: float):
    tb, D = x2_ref.shape
    H = nhead
    hd = D // H
    S = (1 if first else 0) + n_x1 + 1
    scale = float(hd) ** -0.5
    f32 = jnp.float32
    cdt = wq_ref.dtype                    # MXU operand dtype (bf16 fast path)

    # ---- assemble src tokens (cls? | x1 tokens | x2) into f32 VMEM scratch ----
    off = 0
    if first:
        x_sc[0:tb, :] = jnp.broadcast_to(cls_ref[...].astype(f32), (tb, D))
        off = 1
    for t in range(n_x1):
        x_sc[(off + t) * tb:(off + t + 1) * tb, :] = x1_ref[t].astype(f32)
    x_sc[(S - 1) * tb:S * tb, :] = x2_ref[...].astype(f32)

    # ---- fused QKV projection: one (S*tb, D) x (D, D) matmul per q / k / v ----
    x_all = x_sc[...].astype(cdt)
    q_sc[...] = (jnp.dot(x_all, wq_ref[...], preferred_element_type=f32)
                 + bq_ref[...]) * scale                       # scale folded into q
    k_all = jnp.dot(x_all, wk_ref[...], preferred_element_type=f32) + bk_ref[...]
    v_all = jnp.dot(x_all, wv_ref[...], preferred_element_type=f32) + bv_ref[...]
    # lane-concatenated key/value slabs (tb, S*D), shared by all query positions
    for j in range(S):
        kcat_sc[:, j * D:(j + 1) * D] = k_all[j * tb:(j + 1) * tb, :]
        vcat_sc[:, j * D:(j + 1) * D] = v_all[j * tb:(j + 1) * tb, :]

    hsum_blk = hsum_blk_ref[...]          # (S*D, S*H) block-diag head-reduce map
    hexp_blk = hexp_blk_ref[...]          # (S*H, S*D) block-diag head-expand map

    # ---- per-query-position attention (S is tiny: 2-4, fully unrolled) -------
    for i in range(S):
        q_i = q_sc[i * tb:(i + 1) * tb, :]                       # (tb, D) f32
        qk = jnp.concatenate([q_i] * S, axis=1) * kcat_sc[...]   # (tb, S*D)
        logits = jnp.dot(qk, hsum_blk, preferred_element_type=f32)  # (tb, S*H)
        m = logits[:, 0:H]
        for j in range(1, S):
            m = jnp.maximum(m, logits[:, j * H:(j + 1) * H])
        p = jnp.exp(logits - jnp.concatenate([m] * S, axis=1))
        den = p[:, 0:H]
        for j in range(1, S):
            den = den + p[:, j * H:(j + 1) * H]
        p = p * jnp.concatenate([1.0 / den] * S, axis=1)         # exact softmax
        w_all = jnp.dot(p, hexp_blk, preferred_element_type=f32)  # (tb, S*D)
        prod = w_all * vcat_sc[...]
        ctx = prod[:, 0:D]
        for j in range(1, S):
            ctx = ctx + prod[:, j * D:(j + 1) * D]
        ctx_sc[i * tb:(i + 1) * tb, :] = ctx

    # ---- fused output projection + residual + LayerNorm over all S*tb rows ---
    attn_all = (jnp.dot(ctx_sc[...].astype(cdt), wo_ref[...],
                        preferred_element_type=f32) + bo_ref[...])
    res = x_sc[...] + attn_all            # both dropouts are identity (eval mode)
    mu = jnp.mean(res, axis=-1, keepdims=True)
    c = res - mu
    var = jnp.mean(c * c, axis=-1, keepdims=True)
    y = c * jax.lax.rsqrt(var + eps) * gamma_ref[...] + beta_ref[...]
    for i in range(S):
        o_ref[:, i * D:(i + 1) * D] = y[i * tb:(i + 1) * tb, :].astype(o_ref.dtype)


def cross_modal_atten(x1, x2, cls_token, w_qkv, b_qkv, w_out, b_out,
                      gamma, beta, *, nhead=8, eps=1e-5, first=True,
                      tb=1024, compute_dtype=None):
    """Forward pass of Cross_modal_atten (eval mode). Returns (B, S, d_model).

    w_qkv = in_proj_weight.T (D, 3D), w_out = out_proj.weight.T (D, D).
    compute_dtype: dtype fed to the MXU (e.g. jnp.bfloat16); accumulation,
    softmax, residual and LayerNorm always run in float32.
    """
    B, D = x2.shape
    H = nhead
    assert D % H == 0
    hd = D // H
    f32 = jnp.float32
    out_dtype = x2.dtype
    cdt = jnp.dtype(compute_dtype) if compute_dtype is not None else jnp.dtype(x2.dtype)

    # token-major view of x1 (free for the common 2-D case)
    if x1.ndim == 2:
        x1_t = x1[None]                               # (1, B, D)
    else:
        x1_t = jnp.transpose(x1, (1, 0, 2))           # (T, B, D)  (3-D path only)
    T = x1_t.shape[0]
    S = (1 if first else 0) + T + 1
    # TODO(synk): S is fully unrolled in the kernel (the module uses 2-4 tokens);
    # a flash-style looped variant would be needed for long 3-D x1 sequences.
    assert S <= 16, "kernel unrolls over S; intended for the module's tiny S"

    def _cast(a, dt):
        return a if a.dtype == dt else a.astype(dt)

    x1c = _cast(x1_t, cdt)
    x2c = _cast(x2, cdt)
    cls2 = (cls_token.reshape(1, D).astype(cdt) if first
            else jnp.zeros((1, D), cdt))              # unused when first=False

    # small parameters: split fused in-proj, MXU operands in cdt, rest in f32
    wq = w_qkv[:, 0 * D:1 * D].astype(cdt)
    wk = w_qkv[:, 1 * D:2 * D].astype(cdt)
    wv = w_qkv[:, 2 * D:3 * D].astype(cdt)
    wo = w_out.astype(cdt)
    bq = b_qkv[0 * D:1 * D].reshape(1, D).astype(f32)
    bk = b_qkv[1 * D:2 * D].reshape(1, D).astype(f32)
    bv = b_qkv[2 * D:3 * D].reshape(1, D).astype(f32)
    bo = b_out.reshape(1, D).astype(f32)
    g2 = gamma.reshape(1, D).astype(f32)
    b2 = beta.reshape(1, D).astype(f32)

    # block-diagonal one-hot head maps (constant, f32: they multiply f32 scores)
    d2h = (jnp.arange(D)[:, None] // hd == jnp.arange(H)[None, :]).astype(f32)  # (D, H)
    hsum_blk = jnp.kron(jnp.eye(S, dtype=f32), d2h)      # (S*D, S*H)
    hexp_blk = jnp.kron(jnp.eye(S, dtype=f32), d2h.T)    # (S*H, S*D)

    # ---- batch tile: large, VMEM-aware, >=2 grid steps when B allows ---------
    csz = cdt.itemsize
    osz = jnp.dtype(out_dtype).itemsize
    row_bytes = (20 * S * D                      # x/q/ctx/kcat/vcat f32 scratch
                 + 2 * (T + 1) * D * csz         # double-buffered input blocks
                 + 2 * S * D * osz)              # double-buffered output block
    vmem_budget = 20 * 1024 * 1024               # safe on v5e/v6e/v7x scoped VMEM
    tb_cap = max(8, (vmem_budget // (2 * row_bytes)) // 8 * 8)
    tb = max(8, (int(tb) // 8) * 8)
    tb_eff = min(tb, tb_cap, _round_up(B, 8))
    if B >= 16:                                  # >=2 steps -> both v7x TCs busy
        tb_eff = min(tb_eff, _round_up((B + 1) // 2, 8))
    grid = (pl.cdiv(B, tb_eff),)

    kernel = functools.partial(_cross_attn_kernel, nhead=H, n_x1=T,
                               first=bool(first), eps=float(eps))

    out_flat = pl.pallas_call(
        kernel,
        out_shape=jax.ShapeDtypeStruct((B, S * D), out_dtype),
        grid_spec=pltpu.PrefetchScalarGridSpec(
            num_scalar_prefetch=0,
            grid=grid,
            in_specs=[
                pl.BlockSpec((1, D), lambda i: (0, 0)),             # cls row
                pl.BlockSpec((T, tb_eff, D), lambda i: (0, i, 0)),  # x1 tokens
                pl.BlockSpec((tb_eff, D), lambda i: (i, 0)),        # x2
                pl.BlockSpec((D, D), lambda i: (0, 0)),             # wq
                pl.BlockSpec((D, D), lambda i: (0, 0)),             # wk
                pl.BlockSpec((D, D), lambda i: (0, 0)),             # wv
                pl.BlockSpec((D, D), lambda i: (0, 0)),             # wo
                pl.BlockSpec((1, D), lambda i: (0, 0)),             # bq
                pl.BlockSpec((1, D), lambda i: (0, 0)),             # bk
                pl.BlockSpec((1, D), lambda i: (0, 0)),             # bv
                pl.BlockSpec((1, D), lambda i: (0, 0)),             # bo
                pl.BlockSpec((1, D), lambda i: (0, 0)),             # gamma
                pl.BlockSpec((1, D), lambda i: (0, 0)),             # beta
                pl.BlockSpec((S * D, S * H), lambda i: (0, 0)),     # head-reduce map
                pl.BlockSpec((S * H, S * D), lambda i: (0, 0)),     # head-expand map
            ],
            out_specs=pl.BlockSpec((tb_eff, S * D), lambda i: (i, 0)),
            scratch_shapes=[
                pltpu.VMEM((S * tb_eff, D), jnp.float32),   # assembled src (residual)
                pltpu.VMEM((S * tb_eff, D), jnp.float32),   # q (pre-scaled)
                pltpu.VMEM((S * tb_eff, D), jnp.float32),   # ctx (pre out-proj)
                pltpu.VMEM((tb_eff, S * D), jnp.float32),   # k, lane-concat over keys
                pltpu.VMEM((tb_eff, S * D), jnp.float32),   # v, lane-concat over keys
            ]),
        compiler_params=pltpu.CompilerParams(
            dimension_semantics=("parallel",),
            vmem_limit_bytes=48 * 1024 * 1024),
    )(cls2, x1c, x2c, wq, wk, wv, wo, bq, bk, bv, bo, g2, b2, hsum_blk, hexp_blk)

    return out_flat.reshape(B, S, D)          # trailing-dim reshape: free


# ------------------------------- reference ----------------------------------
def _mha_block_reference(src, w_qkv, b_qkv, w_out, b_out, gamma, beta, nhead, eps):
    B, S, D = src.shape
    hd = D // nhead
    qkv = src @ w_qkv + b_qkv
    q = qkv[..., :D].reshape(B, S, nhead, hd)
    k = qkv[..., D:2 * D].reshape(B, S, nhead, hd)
    v = qkv[..., 2 * D:].reshape(B, S, nhead, hd)
    scores = jnp.einsum("bqhd,bkhd->bhqk", q, k) * (float(hd) ** -0.5)
    attn = jax.nn.softmax(scores, axis=-1)
    ctx = jnp.einsum("bhqk,bkhd->bqhd", attn, v).reshape(B, S, D)
    out = ctx @ w_out + b_out
    res = src + out
    mu = res.mean(-1, keepdims=True)
    var = ((res - mu) ** 2).mean(-1, keepdims=True)
    return (res - mu) / jnp.sqrt(var + eps) * gamma + beta


def _reference(x1, x2, cls_token, w_qkv, b_qkv, w_out, b_out, gamma, beta,
               nhead, eps, first):
    if x1.ndim == 2:
        x = jnp.concatenate([x1[:, None, :], x2[:, None, :]], axis=1)
    else:
        x = jnp.concatenate([x1, x2[:, None, :]], axis=1)
    if first:
        cls = jnp.broadcast_to(cls_token.reshape(1, 1, -1),
                               (x.shape[0], 1, x.shape[-1]))
        src = jnp.concatenate([cls, x], axis=1)
    else:
        src = x
    return _mha_block_reference(src, w_qkv, b_qkv, w_out, b_out, gamma, beta,
                                nhead, eps)


if __name__ == "__main__":
    d_model, nhead = 64, 8
    key = jax.random.PRNGKey(0)
    keys = jax.random.split(key, 8)

    w_qkv = jax.random.normal(keys[0], (d_model, 3 * d_model), jnp.float32) * d_model ** -0.5
    b_qkv = jax.random.normal(keys[1], (3 * d_model,), jnp.float32) * 0.02
    w_out = jax.random.normal(keys[2], (d_model, d_model), jnp.float32) * d_model ** -0.5
    b_out = jax.random.normal(keys[3], (d_model,), jnp.float32) * 0.02
    gamma = 1.0 + 0.1 * jax.random.normal(keys[4], (d_model,), jnp.float32)
    beta = 0.05 * jax.random.normal(keys[5], (d_model,), jnp.float32)
    cls_token = jax.random.normal(keys[6], (1, 1, d_model), jnp.float32)
    kx = jax.random.split(keys[7], 4)

    # --- test 1: 2-D inputs, First=True, f32, multi-step batch grid ---------
    b1 = 24
    x1 = jax.random.normal(kx[0], (b1, d_model), jnp.float32)
    x2 = jax.random.normal(kx[1], (b1, d_model), jnp.float32)
    out = cross_modal_atten(x1, x2, cls_token, w_qkv, b_qkv, w_out, b_out,
                            gamma, beta, nhead=nhead, first=True, tb=8)
    out = jax.block_until_ready(out)
    ref = _reference(x1, x2, cls_token, w_qkv, b_qkv, w_out, b_out, gamma, beta,
                     nhead, 1e-5, True)
    assert out.shape == ref.shape, f"shape {out.shape} vs {ref.shape}"
    assert jnp.allclose(out, ref, atol=5e-4, rtol=5e-4), "f32 2-D mismatch"

    # --- test 2: 3-D x1, First=False, f32 -----------------------------------
    b2 = 8
    x1b = jax.random.normal(kx[2], (b2, 2, d_model), jnp.float32)
    x2b = jax.random.normal(kx[3], (b2, d_model), jnp.float32)
    out2 = cross_modal_atten(x1b, x2b, None, w_qkv, b_qkv, w_out, b_out,
                             gamma, beta, nhead=nhead, first=False)
    out2 = jax.block_until_ready(out2)
    ref2 = _reference(x1b, x2b, None, w_qkv, b_qkv, w_out, b_out, gamma, beta,
                      nhead, 1e-5, False)
    assert out2.shape == ref2.shape
    assert jnp.allclose(out2, ref2, atol=5e-4, rtol=5e-4), "f32 3-D mismatch"

    # --- test 3: bf16 MXU operands (fast path), f32 softmax/LN --------------
    out3 = cross_modal_atten(x1, x2, cls_token, w_qkv, b_qkv, w_out, b_out,
                             gamma, beta, nhead=nhead, first=True,
                             compute_dtype=jnp.bfloat16)
    out3 = jax.block_until_ready(out3)
    rnd = lambda a: a.astype(jnp.bfloat16).astype(jnp.float32)
    ref3 = _reference(rnd(x1), rnd(x2), rnd(cls_token), rnd(w_qkv), b_qkv,
                      rnd(w_out), b_out, gamma, beta, nhead, 1e-5, True)
    assert jnp.allclose(out3, ref3, atol=5e-2, rtol=5e-2), "bf16 mismatch"

    print("KERNEL_OK")
</pallas_src>

<mosaic_0001>
module attributes {stable_mosaic.version = 11 : i64} {
  func.func @_cross_attn_kernel(%arg0: i32, %arg1: memref<1x64xf32, #tpu.memory_space<vmem>>, %arg2: memref<1x8x64xf32, #tpu.memory_space<vmem>>, %arg3: memref<8x64xf32, #tpu.memory_space<vmem>>, %arg4: memref<64x64xf32, #tpu.memory_space<vmem>>, %arg5: memref<64x64xf32, #tpu.memory_space<vmem>>, %arg6: memref<64x64xf32, #tpu.memory_space<vmem>>, %arg7: memref<64x64xf32, #tpu.memory_space<vmem>>, %arg8: memref<1x64xf32, #tpu.memory_space<vmem>>, %arg9: memref<1x64xf32, #tpu.memory_space<vmem>>, %arg10: memref<1x64xf32, #tpu.memory_space<vmem>>, %arg11: memref<1x64xf32, #tpu.memory_space<vmem>>, %arg12: memref<1x64xf32, #tpu.memory_space<vmem>>, %arg13: memref<1x64xf32, #tpu.memory_space<vmem>>, %arg14: memref<192x24xf32, #tpu.memory_space<vmem>>, %arg15: memref<24x192xf32, #tpu.memory_space<vmem>>, %arg16: memref<8x192xf32, #tpu.memory_space<vmem>>, %arg17: memref<24x64xf32, #tpu.memory_space<vmem>>, %arg18: memref<24x64xf32, #tpu.memory_space<vmem>>, %arg19: memref<24x64xf32, #tpu.memory_space<vmem>>, %arg20: memref<8x192xf32, #tpu.memory_space<vmem>>, %arg21: memref<8x192xf32, #tpu.memory_space<vmem>>) attributes {dimension_semantics = [#tpu.dimension_semantics<parallel>], iteration_bounds = array<i64: 3>, scalar_prefetch = 0 : i64, scratch_operands = 5 : i64, tpu.core_type = #tpu.core_type<tc>, window_params = [{pipeline_mode = #tpu.pipeline_mode<synchronous>, transform_indices = @transform_0, window_bounds = array<i64: 1, 64>}, {transform_indices = @transform_1, window_bounds = array<i64: 1, 8, 64>}, {transform_indices = @transform_2, window_bounds = array<i64: 8, 64>}, {pipeline_mode = #tpu.pipeline_mode<synchronous>, transform_indices = @transform_3, window_bounds = array<i64: 64, 64>}, {pipeline_mode = #tpu.pipeline_mode<synchronous>, transform_indices = @transform_4, window_bounds = array<i64: 64, 64>}, {pipeline_mode = #tpu.pipeline_mode<synchronous>, transform_indices = @transform_5, window_bounds = array<i64: 64, 64>}, {pipeline_mode = #tpu.pipeline_mode<synchronous>, transform_indices = @transform_6, window_bounds = array<i64: 64, 64>}, {pipeline_mode = #tpu.pipeline_mode<synchronous>, transform_indices = @transform_7, window_bounds = array<i64: 1, 64>}, {pipeline_mode = #tpu.pipeline_mode<synchronous>, transform_indices = @transform_8, window_bounds = array<i64: 1, 64>}, {pipeline_mode = #tpu.pipeline_mode<synchronous>, transform_indices = @transform_9, window_bounds = array<i64: 1, 64>}, {pipeline_mode = #tpu.pipeline_mode<synchronous>, transform_indices = @transform_10, window_bounds = array<i64: 1, 64>}, {pipeline_mode = #tpu.pipeline_mode<synchronous>, transform_indices = @transform_11, window_bounds = array<i64: 1, 64>}, {pipeline_mode = #tpu.pipeline_mode<synchronous>, transform_indices = @transform_12, window_bounds = array<i64: 1, 64>}, {pipeline_mode = #tpu.pipeline_mode<synchronous>, transform_indices = @transform_13, window_bounds = array<i64: 192, 24>}, {pipeline_mode = #tpu.pipeline_mode<synchronous>, transform_indices = @transform_14, window_bounds = array<i64: 24, 192>}, {transform_indices = @transform_15, window_bounds = array<i64: 8, 192>}]} {
    %c0 = arith.constant 0 : index
    %c0_0 = arith.constant 0 : index
    %0 = vector.load %arg1[%c0, %c0_0] : memref<1x64xf32, #tpu.memory_space<vmem>>, vector<1x64xf32>
    %1 = vector.shape_cast %0 : vector<1x64xf32> to vector<1x64xf32>
    %2 = vector.broadcast %1 : vector<1x64xf32> to vector<8x64xf32>
    %c0_1 = arith.constant 0 : index
    %c0_2 = arith.constant 0 : index
    %3 = vector.load %arg17[%c0_1, %c0_2] : memref<24x64xf32, #tpu.memory_space<vmem>>, vector<8x64xf32>
    tpu.vector_store %arg17[%c0_1, %c0_2], %2 {strides = array<i32>} : memref<24x64xf32, #tpu.memory_space<vmem>>, vector<8x64xf32>,
    %c0_3 = arith.constant 0 : index
    %c0_4 = arith.constant 0 : index
    %c0_5 = arith.constant 0 : index
    %4 = vector.load %arg2[%c0_3, %c0_4, %c0_5] : memref<1x8x64xf32, #tpu.memory_space<vmem>>, vector<1x8x64xf32>
    %5 = vector.shape_cast %4 : vector<1x8x64xf32> to vector<8x64xf32>
    %c8 = arith.constant 8 : index
    %c0_6 = arith.constant 0 : index
    %6 = vector.load %arg17[%c8, %c0_6] : memref<24x64xf32, #tpu.memory_space<vmem>>, vector<8x64xf32>
    tpu.vector_store %arg17[%c8, %c0_6], %5 {strides = array<i32>} : memref<24x64xf32, #tpu.memory_space<vmem>>, vector<8x64xf32>,
    %c0_7 = arith.constant 0 : index
    %c0_8 = arith.constant 0 : index
    %7 = vector.load %arg3[%c0_7, %c0_8] : memref<8x64xf32, #tpu.memory_space<vmem>>, vector<8x64xf32>
    %c16 = arith.constant 16 : index
    %c0_9 = arith.constant 0 : index
    %8 = vector.load %arg17[%c16, %c0_9] : memref<24x64xf32, #tpu.memory_space<vmem>>, vector<8x64xf32>
    tpu.vector_store %arg17[%c16, %c0_9], %7 {strides = array<i32>} : memref<24x64xf32, #tpu.memory_space<vmem>>, vector<8x64xf32>,
    %c0_10 = arith.constant 0 : index
    %c0_11 = arith.constant 0 : index
    %9 = vector.load %arg17[%c0_10, %c0_11] : memref<24x64xf32, #tpu.memory_space<vmem>>, vector<24x64xf32>
    %c0_12 = arith.constant 0 : index
    %c0_13 = arith.constant 0 : index
    %10 = vector.load %arg4[%c0_12, %c0_13] : memref<64x64xf32, #tpu.memory_space<vmem>>, vector<64x64xf32>
    %cst = arith.constant dense<0.000000e+00> : vector<24x64xf32>
    %11 = tpu.matmul %9, %10, %cst {dimension_numbers = #tpu.dot_dimension_numbers<[1], [0], [0], [1], [0, 0, 1, 1], [], []>} : vector<24x64xf32>, vector<64x64xf32>, vector<24x64xf32> -> vector<24x64xf32>
    %c0_14 = arith.constant 0 : index
    %c0_15 = arith.constant 0 : index
    %12 = vector.load %arg8[%c0_14, %c0_15] : memref<1x64xf32, #tpu.memory_space<vmem>>, vector<1x64xf32>
    %13 = vector.broadcast %12 : vector<1x64xf32> to vector<24x64xf32>
    %14 = arith.addf %11, %13 : vector<24x64xf32>
    %cst_16 = arith.constant 0.353553385 : f32
    %15 = vector.broadcast %cst_16 : f32 to vector<24x64xf32>
    %16 = arith.mulf %14, %15 : vector<24x64xf32>
    %c0_17 = arith.constant 0 : index
    %c0_18 = arith.constant 0 : index
    %17 = vector.load %arg18[%c0_17, %c0_18] : memref<24x64xf32, #tpu.memory_space<vmem>>, vector<24x64xf32>
    tpu.vector_store %arg18[%c0_17, %c0_18], %16 {strides = array<i32>} : memref<24x64xf32, #tpu.memory_space<vmem>>, vector<24x64xf32>,
    %c0_19 = arith.constant 0 : index
    %c0_20 = arith.constant 0 : index
    %18 = vector.load %arg5[%c0_19, %c0_20] : memref<64x64xf32, #tpu.memory_space<vmem>>, vector<64x64xf32>
    %cst_21 = arith.constant dense<0.000000e+00> : vector<24x64xf32>
    %19 = tpu.matmul %9, %18, %cst_21 {dimension_numbers = #tpu.dot_dimension_numbers<[1], [0], [0], [1], [0, 0, 1, 1], [], []>} : vector<24x64xf32>, vector<64x64xf32>, vector<24x64xf32> -> vector<24x64xf32>
    %c0_22 = arith.constant 0 : index
    %c0_23 = arith.constant 0 : index
    %20 = vector.load %arg9[%c0_22, %c0_23] : memref<1x64xf32, #tpu.memory_space<vmem>>, vector<1x64xf32>
    %21 = vector.broadcast %20 : vector<1x64xf32> to vector<24x64xf32>
    %22 = arith.addf %19, %21 : vector<24x64xf32>
    %c0_24 = arith.constant 0 : index
    %c0_25 = arith.constant 0 : index
    %23 = vector.load %arg6[%c0_24, %c0_25] : memref<64x64xf32, #tpu.memory_space<vmem>>, vector<64x64xf32>
    %cst_26 = arith.constant dense<0.000000e+00> : vector<24x64xf32>
    %24 = tpu.matmul %9, %23, %cst_26 {dimension_numbers = #tpu.dot_dimension_numbers<[1], [0], [0], [1], [0, 0, 1, 1], [], []>} : vector<24x64xf32>, vector<64x64xf32>, vector<24x64xf32> -> vector<24x64xf32>
    %c0_27 = arith.constant 0 : index
    %c0_28 = arith.constant 0 : index
    %25 = vector.load %arg10[%c0_27, %c0_28] : memref<1x64xf32, #tpu.memory_space<vmem>>, vector<1x64xf32>
    %26 = vector.broadcast %25 : vector<1x64xf32> to vector<24x64xf32>
    %27 = arith.addf %24, %26 : vector<24x64xf32>
    %28 = vector.extract_strided_slice %22 {offsets = [0, 0], sizes = [8, 64], strides = [1, 1]} : vector<24x64xf32> to vector<8x64xf32>
    %c0_29 = arith.constant 0 : index
    %c0_30 = arith.constant 0 : index
    %29 = vector.load %arg20[%c0_29, %c0_30] : memref<8x192xf32, #tpu.memory_space<vmem>>, vector<8x64xf32>
    tpu.vector_store %arg20[%c0_29, %c0_30], %28 {strides = array<i32>} : memref<8x192xf32, #tpu.memory_space<vmem>>, vector<8x64xf32>,
    %30 = vector.extract_strided_slice %27 {offsets = [0, 0], sizes = [8, 64], strides = [1, 1]} : vector<24x64xf32> to vector<8x64xf32>
    %c0_31 = arith.constant 0 : index
    %c0_32 = arith.constant 0 : index
    %31 = vector.load %arg21[%c0_31, %c0_32] : memref<8x192xf32, #tpu.memory_space<vmem>>, vector<8x64xf32>
    tpu.vector_store %arg21[%c0_31, %c0_32], %30 {strides = array<i32>} : memref<8x192xf32, #tpu.memory_space<vmem>>, vector<8x64xf32>,
    %32 = vector.extract_strided_slice %22 {offsets = [8, 0], sizes = [8, 64], strides = [1, 1]} : vector<24x64xf32> to vector<8x64xf32>
    %c0_33 = arith.constant 0 : index
    %c64 = arith.constant 64 : index
    %33 = vector.load %arg20[%c0_33, %c64] : memref<8x192xf32, #tpu.memory_space<vmem>>, vector<8x64xf32>
    tpu.vector_store %arg20[%c0_33, %c64], %32 {strides = array<i32>} : memref<8x192xf32, #tpu.memory_space<vmem>>, vector<8x64xf32>,
    %34 = vector.extract_strided_slice %27 {offsets = [8, 0], sizes = [8, 64], strides = [1, 1]} : vector<24x64xf32> to vector<8x64xf32>
    %c0_34 = arith.constant 0 : index
    %c64_35 = arith.constant 64 : index
    %35 = vector.load %arg21[%c0_34, %c64_35] : memref<8x192xf32, #tpu.memory_space<vmem>>, vector<8x64xf32>
    tpu.vector_store %arg21[%c0_34, %c64_35], %34 {strides = array<i32>} : memref<8x192xf32, #tpu.memory_space<vmem>>, vector<8x64xf32>,
    %36 = vector.extract_strided_slice %22 {offsets = [16, 0], sizes = [8, 64], strides = [1, 1]} : vector<24x64xf32> to vector<8x64xf32>
    %c0_36 = arith.constant 0 : index
    %c128 = arith.constant 128 : index
    %37 = vector.load %arg20[%c0_36, %c128] : memref<8x192xf32, #tpu.memory_space<vmem>>, vector<8x64xf32>
    tpu.vector_store %arg20[%c0_36, %c128], %36 {strides = array<i32>} : memref<8x192xf32, #tpu.memory_space<vmem>>, vector<8x64xf32>,
    %38 = vector.extract_strided_slice %27 {offsets = [16, 0], sizes = [8, 64], strides = [1, 1]} : vector<24x64xf32> to vector<8x64xf32>
    %c0_37 = arith.constant 0 : index
    %c128_38 = arith.constant 128 : index
    %39 = vector.load %arg21[%c0_37, %c128_38] : memref<8x192xf32, #tpu.memory_space<vmem>>, vector<8x64xf32>
    tpu.vector_store %arg21[%c0_37, %c128_38], %38 {strides = array<i32>} : memref<8x192xf32, #tpu.memory_space<vmem>>, vector<8x64xf32>,
    %c0_39 = arith.constant 0 : index
    %c0_40 = arith.constant 0 : index
    %40 = vector.load %arg14[%c0_39, %c0_40] : memref<192x24xf32, #tpu.memory_space<vmem>>, vector<192x24xf32>
    %c0_41 = arith.constant 0 : index
    %c0_42 = arith.constant 0 : index
    %41 = vector.load %arg15[%c0_41, %c0_42] : memref<24x192xf32, #tpu.memory_space<vmem>>, vector<24x192xf32>
    %c0_43 = arith.constant 0 : index
    %c0_44 = arith.constant 0 : index
    %42 = vector.load %arg18[%c0_43, %c0_44] : memref<24x64xf32, #tpu.memory_space<vmem>>, vector<8x64xf32>
    %43 = tpu.concatenate %42, %42, %42 in 1 : vector<8x64xf32>, vector<8x64xf32>, vector<8x64xf32> -> vector<8x192xf32>
    %c0_45 = arith.constant 0 : index
    %c0_46 = arith.constant 0 : index
    %44 = vector.load %arg20[%c0_45, %c0_46] : memref<8x192xf32, #tpu.memory_space<vmem>>, vector<8x192xf32>
    %45 = arith.mulf %43, %44 : vector<8x192xf32>
    %cst_47 = arith.constant dense<0.000000e+00> : vector<8x24xf32>
    %46 = tpu.matmul %45, %40, %cst_47 {dimension_numbers = #tpu.dot_dimension_numbers<[1], [0], [0], [1], [0, 0, 1, 1], [], []>} : vector<8x192xf32>, vector<192x24xf32>, vector<8x24xf32> -> vector<8x24xf32>
    %47 = vector.extract_strided_slice %46 {offsets = [0, 0], sizes = [8, 8], strides = [1, 1]} : vector<8x24xf32> to vector<8x8xf32>
    %48 = vector.extract_strided_slice %46 {offsets = [0, 8], sizes = [8, 8], strides = [1, 1]} : vector<8x24xf32> to vector<8x8xf32>
    %49 = arith.maximumf %47, %48 : vector<8x8xf32>
    %50 = vector.extract_strided_slice %46 {offsets = [0, 16], sizes = [8, 8], strides = [1, 1]} : vector<8x24xf32> to vector<8x8xf32>
    %51 = arith.maximumf %49, %50 : vector<8x8xf32>
    %52 = tpu.concatenate %51, %51, %51 in 1 : vector<8x8xf32>, vector<8x8xf32>, vector<8x8xf32> -> vector<8x24xf32>
    %53 = arith.subf %46, %52 : vector<8x24xf32>
    %54 = math.exp %53 : vector<8x24xf32>
    %55 = vector.extract_strided_slice %54 {offsets = [0, 0], sizes = [8, 8], strides = [1, 1]} : vector<8x24xf32> to vector<8x8xf32>
    %56 = vector.extract_strided_slice %54 {offsets = [0, 8], sizes = [8, 8], strides = [1, 1]} : vector<8x24xf32> to vector<8x8xf32>
    %57 = arith.addf %55, %56 : vector<8x8xf32>
    %58 = vector.extract_strided_slice %54 {offsets = [0, 16], sizes = [8, 8], strides = [1, 1]} : vector<8x24xf32> to vector<8x8xf32>
    %59 = arith.addf %57, %58 : vector<8x8xf32>
    %cst_48 = arith.constant 1.000000e+00 : f32
    %60 = vector.broadcast %cst_48 : f32 to vector<8x8xf32>
    %61 = arith.divf %60, %59 : vector<8x8xf32>
    %62 = tpu.concatenate %61, %61, %61 in 1 : vector<8x8xf32>, vector<8x8xf32>, vector<8x8xf32> -> vector<8x24xf32>
    %63 = arith.mulf %54, %62 : vector<8x24xf32>
    %cst_49 = arith.constant dense<0.000000e+00> : vector<8x192xf32>
    %64 = tpu.matmul %63, %41, %cst_49 {dimension_numbers = #tpu.dot_dimension_numbers<[1], [0], [0], [1], [0, 0, 1, 1], [], []>} : vector<8x24xf32>, vector<24x192xf32>, vector<8x192xf32> -> vector<8x192xf32>
    %c0_50 = arith.constant 0 : index
    %c0_51 = arith.constant 0 : index
    %65 = vector.load %arg21[%c0_50, %c0_51] : memref<8x192xf32, #tpu.memory_space<vmem>>, vector<8x192xf32>
    %66 = arith.mulf %64, %65 : vector<8x192xf32>
    %67 = vector.extract_strided_slice %66 {offsets = [0, 0], sizes = [8, 64], strides = [1, 1]} : vector<8x192xf32> to vector<8x64xf32>
    %68 = vector.extract_strided_slice %66 {offsets = [0, 64], sizes = [8, 64], strides = [1, 1]} : vector<8x192xf32> to vector<8x64xf32>
    %69 = arith.addf %67, %68 : vector<8x64xf32>
    %70 = vector.extract_strided_slice %66 {offsets = [0, 128], sizes = [8, 64], strides = [1, 1]} : vector<8x192xf32> to vector<8x64xf32>
    %71 = arith.addf %69, %70 : vector<8x64xf32>
    %c0_52 = arith.constant 0 : index
    %c0_53 = arith.constant 0 : index
    %72 = vector.load %arg19[%c0_52, %c0_53] : memref<24x64xf32, #tpu.memory_space<vmem>>, vector<8x64xf32>
    tpu.vector_store %arg19[%c0_52, %c0_53], %71 {strides = array<i32>} : memref<24x64xf32, #tpu.memory_space<vmem>>, vector<8x64xf32>,
    %c8_54 = arith.constant 8 : index
    %c0_55 = arith.constant 0 : index
    %73 = vector.load %arg18[%c8_54, %c0_55] : memref<24x64xf32, #tpu.memory_space<vmem>>, vector<8x64xf32>
    %74 = tpu.concatenate %73, %73, %73 in 1 : vector<8x64xf32>, vector<8x64xf32>, vector<8x64xf32> -> vector<8x192xf32>
    %c0_56 = arith.constant 0 : index
    %c0_57 = arith.constant 0 : index
    %75 = vector.load %arg20[%c0_56, %c0_57] : memref<8x192xf32, #tpu.memory_space<vmem>>, vector<8x192xf32>
    %76 = arith.mulf %74, %75 : vector<8x192xf32>
    %cst_58 = arith.constant dense<0.000000e+00> : vector<8x24xf32>
    %77 = tpu.matmul %76, %40, %cst_58 {dimension_numbers = #tpu.dot_dimension_numbers<[1], [0], [0], [1], [0, 0, 1, 1], [], []>} : vector<8x192xf32>, vector<192x24xf32>, vector<8x24xf32> -> vector<8x24xf32>
    %78 = vector.extract_strided_slice %77 {offsets = [0, 0], sizes = [8, 8], strides = [1, 1]} : vector<8x24xf32> to vector<8x8xf32>
    %79 = vector.extract_strided_slice %77 {offsets = [0, 8], sizes = [8, 8], strides = [1, 1]} : vector<8x24xf32> to vector<8x8xf32>
    %80 = arith.maximumf %78, %79 : vector<8x8xf32>
    %81 = vector.extract_strided_slice %77 {offsets = [0, 16], sizes = [8, 8], strides = [1, 1]} : vector<8x24xf32> to vector<8x8xf32>
    %82 = arith.maximumf %80, %81 : vector<8x8xf32>
    %83 = tpu.concatenate %82, %82, %82 in 1 : vector<8x8xf32>, vector<8x8xf32>, vector<8x8xf32> -> vector<8x24xf32>
    %84 = arith.subf %77, %83 : vector<8x24xf32>
    %85 = math.exp %84 : vector<8x24xf32>
    %86 = vector.extract_strided_slice %85 {offsets = [0, 0], sizes = [8, 8], strides = [1, 1]} : vector<8x24xf32> to vector<8x8xf32>
    %87 = vector.extract_strided_slice %85 {offsets = [0, 8], sizes = [8, 8], strides = [1, 1]} : vector<8x24xf32> to vector<8x8xf32>
    %88 = arith.addf %86, %87 : vector<8x8xf32>
    %89 = vector.extract_strided_slice %85 {offsets = [0, 16], sizes = [8, 8], strides = [1, 1]} : vector<8x24xf32> to vector<8x8xf32>
    %90 = arith.addf %88, %89 : vector<8x8xf32>
    %cst_59 = arith.constant 1.000000e+00 : f32
    %91 = vector.broadcast %cst_59 : f32 to vector<8x8xf32>
    %92 = arith.divf %91, %90 : vector<8x8xf32>
    %93 = tpu.concatenate %92, %92, %92 in 1 : vector<8x8xf32>, vector<8x8xf32>, vector<8x8xf32> -> vector<8x24xf32>
    %94 = arith.mulf %85, %93 : vector<8x24xf32>
    %cst_60 = arith.constant dense<0.000000e+00> : vector<8x192xf32>
    %95 = tpu.matmul %94, %41, %cst_60 {dimension_numbers = #tpu.dot_dimension_numbers<[1], [0], [0], [1], [0, 0, 1, 1], [], []>} : vector<8x24xf32>, vector<24x192xf32>, vector<8x192xf32> -> vector<8x192xf32>
    %c0_61 = arith.constant 0 : index
    %c0_62 = arith.constant 0 : index
    %96 = vector.load %arg21[%c0_61, %c0_62] : memref<8x192xf32, #tpu.memory_space<vmem>>, vector<8x192xf32>
    %97 = arith.mulf %95, %96 : vector<8x192xf32>
    %98 = vector.extract_strided_slice %97 {offsets = [0, 0], sizes = [8, 64], strides = [1, 1]} : vector<8x192xf32> to vector<8x64xf32>
    %99 = vector.extract_strided_slice %97 {offsets = [0, 64], sizes = [8, 64], strides = [1, 1]} : vector<8x192xf32> to vector<8x64xf32>
    %100 = arith.addf %98, %99 : vector<8x64xf32>
    %101 = vector.extract_strided_slice %97 {offsets = [0, 128], sizes = [8, 64], strides = [1, 1]} : vector<8x192xf32> to vector<8x64xf32>
    %102 = arith.addf %100, %101 : vector<8x64xf32>
    %c8_63 = arith.constant 8 : index
    %c0_64 = arith.constant 0 : index
    %103 = vector.load %arg19[%c8_63, %c0_64] : memref<24x64xf32, #tpu.memory_space<vmem>>, vector<8x64xf32>
    tpu.vector_store %arg19[%c8_63, %c0_64], %102 {strides = array<i32>} : memref<24x64xf32, #tpu.memory_space<vmem>>, vector<8x64xf32>,
    %c16_65 = arith.constant 16 : index
    %c0_66 = arith.constant 0 : index
    %104 = vector.load %arg18[%c16_65, %c0_66] : memref<24x64xf32, #tpu.memory_space<vmem>>, vector<8x64xf32>
    %105 = tpu.concatenate %104, %104, %104 in 1 : vector<8x64xf32>, vector<8x64xf32>, vector<8x64xf32> -> vector<8x192xf32>
    %c0_67 = arith.constant 0 : index
    %c0_68 = arith.constant 0 : index
    %106 = vector.load %arg20[%c0_67, %c0_68] : memref<8x192xf32, #tpu.memory_space<vmem>>, vector<8x192xf32>
    %107 = arith.mulf %105, %106 : vector<8x192xf32>
    %cst_69 = arith.constant dense<0.000000e+00> : vector<8x24xf32>
    %108 = tpu.matmul %107, %40, %cst_69 {dimension_numbers = #tpu.dot_dimension_numbers<[1], [0], [0], [1], [0, 0, 1, 1], [], []>} : vector<8x192xf32>, vector<192x24xf32>, vector<8x24xf32> -> vector<8x24xf32>
    %109 = vector.extract_strided_slice %108 {offsets = [0, 0], sizes = [8, 8], strides = [1, 1]} : vector<8x24xf32> to vector<8x8xf32>
    %110 = vector.extract_strided_slice %108 {offsets = [0, 8], sizes = [8, 8], strides = [1, 1]} : vector<8x24xf32> to vector<8x8xf32>
    %111 = arith.maximumf %109, %110 : vector<8x8xf32>
    %112 = vector.extract_strided_slice %108 {offsets = [0, 16], sizes = [8, 8], strides = [1, 1]} : vector<8x24xf32> to vector<8x8xf32>
    %113 = arith.maximumf %111, %112 : vector<8x8xf32>
    %114 = tpu.concatenate %113, %113, %113 in 1 : vector<8x8xf32>, vector<8x8xf32>, vector<8x8xf32> -> vector<8x24xf32>
    %115 = arith.subf %108, %114 : vector<8x24xf32>
    %116 = math.exp %115 : vector<8x24xf32>
    %117 = vector.extract_strided_slice %116 {offsets = [0, 0], sizes = [8, 8], strides = [1, 1]} : vector<8x24xf32> to vector<8x8xf32>
    %118 = vector.extract_strided_slice %116 {offsets = [0, 8], sizes = [8, 8], strides = [1, 1]} : vector<8x24xf32> to vector<8x8xf32>
    %119 = arith.addf %117, %118 : vector<8x8xf32>
    %120 = vector.extract_strided_slice %116 {offsets = [0, 16], sizes = [8, 8], strides = [1, 1]} : vector<8x24xf32> to vector<8x8xf32>
    %121 = arith.addf %119, %120 : vector<8x8xf32>
    %cst_70 = arith.constant 1.000000e+00 : f32
    %122 = vector.broadcast %cst_70 : f32 to vector<8x8xf32>
    %123 = arith.divf %122, %121 : vector<8x8xf32>
    %124 = tpu.concatenate %123, %123, %123 in 1 : vector<8x8xf32>, vector<8x8xf32>, vector<8x8xf32> -> vector<8x24xf32>
    %125 = arith.mulf %116, %124 : vector<8x24xf32>
    %cst_71 = arith.constant dense<0.000000e+00> : vector<8x192xf32>
    %126 = tpu.matmul %125, %41, %cst_71 {dimension_numbers = #tpu.dot_dimension_numbers<[1], [0], [0], [1], [0, 0, 1, 1], [], []>} : vector<8x24xf32>, vector<24x192xf32>, vector<8x192xf32> -> vector<8x192xf32>
    %c0_72 = arith.constant 0 : index
    %c0_73 = arith.constant 0 : index
    %127 = vector.load %arg21[%c0_72, %c0_73] : memref<8x192xf32, #tpu.memory_space<vmem>>, vector<8x192xf32>
    %128 = arith.mulf %126, %127 : vector<8x192xf32>
    %129 = vector.extract_strided_slice %128 {offsets = [0, 0], sizes = [8, 64], strides = [1, 1]} : vector<8x192xf32> to vector<8x64xf32>
    %130 = vector.extract_strided_slice %128 {offsets = [0, 64], sizes = [8, 64], strides = [1, 1]} : vector<8x192xf32> to vector<8x64xf32>
    %131 = arith.addf %129, %130 : vector<8x64xf32>
    %132 = vector.extract_strided_slice %128 {offsets = [0, 128], sizes = [8, 64], strides = [1, 1]} : vector<8x192xf32> to vector<8x64xf32>
    %133 = arith.addf %131, %132 : vector<8x64xf32>
    %c16_74 = arith.constant 16 : index
    %c0_75 = arith.constant 0 : index
    %134 = vector.load %arg19[%c16_74, %c0_75] : memref<24x64xf32, #tpu.memory_space<vmem>>, vector<8x64xf32>
    tpu.vector_store %arg19[%c16_74, %c0_75], %133 {strides = array<i32>} : memref<24x64xf32, #tpu.memory_space<vmem>>, vector<8x64xf32>,
    %c0_76 = arith.constant 0 : index
    %c0_77 = arith.constant 0 : index
    %135 = vector.load %arg19[%c0_76, %c0_77] : memref<24x64xf32, #tpu.memory_space<vmem>>, vector<24x64xf32>
    %c0_78 = arith.constant 0 : index
    %c0_79 = arith.constant 0 : index
    %136 = vector.load %arg7[%c0_78, %c0_79] : memref<64x64xf32, #tpu.memory_space<vmem>>, vector<64x64xf32>
    %cst_80 = arith.constant dense<0.000000e+00> : vector<24x64xf32>
    %137 = tpu.matmul %135, %136, %cst_80 {dimension_numbers = #tpu.dot_dimension_numbers<[1], [0], [0], [1], [0, 0, 1, 1], [], []>} : vector<24x64xf32>, vector<64x64xf32>, vector<24x64xf32> -> vector<24x64xf32>
    %c0_81 = arith.constant 0 : index
    %c0_82 = arith.constant 0 : index
    %138 = vector.load %arg11[%c0_81, %c0_82] : memref<1x64xf32, #tpu.memory_space<vmem>>, vector<1x64xf32>
    %139 = vector.broadcast %138 : vector<1x64xf32> to vector<24x64xf32>
    %140 = arith.addf %137, %139 : vector<24x64xf32>
    %c0_83 = arith.constant 0 : index
    %c0_84 = arith.constant 0 : index
    %141 = vector.load %arg17[%c0_83, %c0_84] : memref<24x64xf32, #tpu.memory_space<vmem>>, vector<24x64xf32>
    %142 = arith.addf %141, %140 : vector<24x64xf32>
    %cst_85 = arith.constant dense<0.000000e+00> : vector<24xf32>
    %143 = vector.multi_reduction <add>, %142, %cst_85 [1] : vector<24x64xf32> to vector<24xf32>
    %144 = vector.shape_cast %143 : vector<24xf32> to vector<24x1xf32>
    %cst_86 = arith.constant 6.400000e+01 : f32
    %145 = vector.broadcast %cst_86 : f32 to vector<24x1xf32>
    %146 = arith.divf %144, %145 : vector<24x1xf32>
    %147 = vector.broadcast %146 : vector<24x1xf32> to vector<24x64xf32>
    %148 = arith.subf %142, %147 : vector<24x64xf32>
    %149 = arith.mulf %148, %148 : vector<24x64xf32>
    %cst_87 = arith.constant dense<0.000000e+00> : vector<24xf32>
    %150 = vector.multi_reduction <add>, %149, %cst_87 [1] : vector<24x64xf32> to vector<24xf32>
    %151 = vector.shape_cast %150 : vector<24xf32> to vector<24x1xf32>
    %cst_88 = arith.constant 6.400000e+01 : f32
    %152 = vector.broadcast %cst_88 : f32 to vector<24x1xf32>
    %153 = arith.divf %151, %152 : vector<24x1xf32>
    %cst_89 = arith.constant 9.99999974E-6 : f32
    %154 = vector.broadcast %cst_89 : f32 to vector<24x1xf32>
    %155 = arith.addf %153, %154 : vector<24x1xf32>
    %156 = math.rsqrt %155 : vector<24x1xf32>
    %157 = vector.broadcast %156 : vector<24x1xf32> to vector<24x64xf32>
    %158 = arith.mulf %148, %157 : vector<24x64xf32>
    %c0_90 = arith.constant 0 : index
    %c0_91 = arith.constant 0 : index
    %159 = vector.load %arg12[%c0_90, %c0_91] : memref<1x64xf32, #tpu.memory_space<vmem>>, vector<1x64xf32>
    %160 = vector.broadcast %159 : vector<1x64xf32> to vector<24x64xf32>
    %161 = arith.mulf %158, %160 : vector<24x64xf32>
    %c0_92 = arith.constant 0 : index
    %c0_93 = arith.constant 0 : index
    %162 = vector.load %arg13[%c0_92, %c0_93] : memref<1x64xf32, #tpu.memory_space<vmem>>, vector<1x64xf32>
    %163 = vector.broadcast %162 : vector<1x64xf32> to vector<24x64xf32>
    %164 = arith.addf %161, %163 : vector<24x64xf32>
    %165 = vector.extract_strided_slice %164 {offsets = [0, 0], sizes = [8, 64], strides = [1, 1]} : vector<24x64xf32> to vector<8x64xf32>
    %c0_94 = arith.constant 0 : index
    %c0_95 = arith.constant 0 : index
    %166 = vector.load %arg16[%c0_94, %c0_95] : memref<8x192xf32, #tpu.memory_space<vmem>>, vector<8x64xf32>
    tpu.vector_store %arg16[%c0_94, %c0_95], %165 {strides = array<i32>} : memref<8x192xf32, #tpu.memory_space<vmem>>, vector<8x64xf32>,
    %167 = vector.extract_strided_slice %164 {offsets = [8, 0], sizes = [8, 64], strides = [1, 1]} : vector<24x64xf32> to vector<8x64xf32>
    %c0_96 = arith.constant 0 : index
    %c64_97 = arith.constant 64 : index
    %168 = vector.load %arg16[%c0_96, %c64_97] : memref<8x192xf32, #tpu.memory_space<vmem>>, vector<8x64xf32>
    tpu.vector_store %arg16[%c0_96, %c64_97], %167 {strides = array<i32>} : memref<8x192xf32, #tpu.memory_space<vmem>>, vector<8x64xf32>,
    %169 = vector.extract_strided_slice %164 {offsets = [16, 0], sizes = [8, 64], strides = [1, 1]} : vector<24x64xf32> to vector<8x64xf32>
    %c0_98 = arith.constant 0 : index
    %c128_99 = arith.constant 128 : index
    %170 = vector.load %arg16[%c0_98, %c128_99] : memref<8x192xf32, #tpu.memory_space<vmem>>, vector<8x64xf32>
    tpu.vector_store %arg16[%c0_98, %c128_99], %169 {strides = array<i32>} : memref<8x192xf32, #tpu.memory_space<vmem>>, vector<8x64xf32>,
    return
  }
  func.func @transform_0(%arg0: i32) -> (i32, i32) {
    %c0_i32 = arith.constant 0 : i32
    %c0_i32_0 = arith.constant 0 : i32
    %c0_i32_1 = arith.constant 0 : i32
    return %c0_i32, %c0_i32_0 : i32, i32
  }
  func.func @transform_1(%arg0: i32) -> (i32, i32, i32) {
    %c0_i32 = arith.constant 0 : i32
    %c0_i32_0 = arith.constant 0 : i32
    %c0_i32_1 = arith.constant 0 : i32
    return %c0_i32, %arg0, %c0_i32_0 : i32, i32, i32
  }
  func.func @transform_2(%arg0: i32) -> (i32, i32) {
    %c0_i32 = arith.constant 0 : i32
    %c0_i32_0 = arith.constant 0 : i32
    return %arg0, %c0_i32 : i32, i32
  }
  func.func @transform_3(%arg0: i32) -> (i32, i32) {
    %c0_i32 = arith.constant 0 : i32
    %c0_i32_0 = arith.constant 0 : i32
    %c0_i32_1 = arith.constant 0 : i32
    return %c0_i32, %c0_i32_0 : i32, i32
  }
  func.func @transform_4(%arg0: i32) -> (i32, i32) {
    %c0_i32 = arith.constant 0 : i32
    %c0_i32_0 = arith.constant 0 : i32
    %c0_i32_1 = arith.constant 0 : i32
    return %c0_i32, %c0_i32_0 : i32, i32
  }
  func.func @transform_5(%arg0: i32) -> (i32, i32) {
    %c0_i32 = arith.constant 0 : i32
    %c0_i32_0 = arith.constant 0 : i32
    %c0_i32_1 = arith.constant 0 : i32
    return %c0_i32, %c0_i32_0 : i32, i32
  }
  func.func @transform_6(%arg0: i32) -> (i32, i32) {
    %c0_i32 = arith.constant 0 : i32
    %c0_i32_0 = arith.constant 0 : i32
    %c0_i32_1 = arith.constant 0 : i32
    return %c0_i32, %c0_i32_0 : i32, i32
  }
  func.func @transform_7(%arg0: i32) -> (i32, i32) {
    %c0_i32 = arith.constant 0 : i32
    %c0_i32_0 = arith.constant 0 : i32
    %c0_i32_1 = arith.constant 0 : i32
    return %c0_i32, %c0_i32_0 : i32, i32
  }
  func.func @transform_8(%arg0: i32) -> (i32, i32) {
    %c0_i32 = arith.constant 0 : i32
    %c0_i32_0 = arith.constant 0 : i32
    %c0_i32_1 = arith.constant 0 : i32
    return %c0_i32, %c0_i32_0 : i32, i32
  }
  func.func @transform_9(%arg0: i32) -> (i32, i32) {
    %c0_i32 = arith.constant 0 : i32
    %c0_i32_0 = arith.constant 0 : i32
    %c0_i32_1 = arith.constant 0 : i32
    return %c0_i32, %c0_i32_0 : i32, i32
  }
  func.func @transform_10(%arg0: i32) -> (i32, i32) {
    %c0_i32 = arith.constant 0 : i32
    %c0_i32_0 = arith.constant 0 : i32
    %c0_i32_1 = arith.constant 0 : i32
    return %c0_i32, %c0_i32_0 : i32, i32
  }
  func.func @transform_11(%arg0: i32) -> (i32, i32) {
    %c0_i32 = arith.constant 0 : i32
    %c0_i32_0 = arith.constant 0 : i32
    %c0_i32_1 = arith.constant 0 : i32
    return %c0_i32, %c0_i32_0 : i32, i32
  }
  func.func @transform_12(%arg0: i32) -> (i32, i32) {
    %c0_i32 = arith.constant 0 : i32
    %c0_i32_0 = arith.constant 0 : i32
    %c0_i32_1 = arith.constant 0 : i32
    return %c0_i32, %c0_i32_0 : i32, i32
  }
  func.func @transform_13(%arg0: i32) -> (i32, i32) {
    %c0_i32 = arith.constant 0 : i32
    %c0_i32_0 = arith.constant 0 : i32
    %c0_i32_1 = arith.constant 0 : i32
    return %c0_i32, %c0_i32_0 : i32, i32
  }
  func.func @transform_14(%arg0: i32) -> (i32, i32) {
    %c0_i32 = arith.constant 0 : i32
    %c0_i32_0 = arith.constant 0 : i32
    %c0_i32_1 = arith.constant 0 : i32
    return %c0_i32, %c0_i32_0 : i32, i32
  }
  func.func @transform_15(%arg0: i32) -> (i32, i32) {
    %c0_i32 = arith.constant 0 : i32
    %c0_i32_0 = arith.constant 0 : i32
    return %arg0, %c0_i32 : i32, i32
  }
}

</mosaic_0001>

<llo_original>
// kernel: tpu_custom_call.1
$region0: #{tpu_custom_call.1}
  #allocation0 [shape = 'u32[]', space=smem, size = 0x4, offset = 0x4, fixed_abs, tag = 'smem constant byte address 0x4 - core index']
  #allocation1 [shape = 'u32[144,128]{1,0:T(1,128)}', space=vmem, size = 0x12000, scoped, tag = 'internal scratch']
  #allocation2 [shape = 'f32[24,64]{1,0:T(8,128)}', space=vmem, size = 0x3000, scoped, tag = 'scratch operand']
  #allocation3 [shape = 'f32[24,64]{1,0:T(8,128)}', space=vmem, size = 0x3000, scoped, tag = 'scratch operand']
  #allocation4 [shape = 'f32[24,64]{1,0:T(8,128)}', space=vmem, size = 0x3000, scoped, tag = 'scratch operand']
  #allocation5 [shape = 'f32[8,192]{1,0:T(8,128)}', space=vmem, size = 0x2000, scoped, tag = 'scratch operand']
  #allocation6 [shape = 'f32[8,192]{1,0:T(8,128)}', space=vmem, size = 0x2000, scoped, tag = 'scratch operand']
  %s0 = inlined_call_operand.hbm [shape: f32[1,64], index: 0, kind: input, shape index: {}]
  %s1 = inlined_call_operand.hbm [shape: f32[1,24,64], index: 1, kind: input, shape index: {}]
  %s2 = inlined_call_operand.hbm [shape: f32[24,64], index: 2, kind: input, shape index: {}]
  %s3 = inlined_call_operand.vmem [shape: f32[64,64], index: 3, kind: input, shape index: {}]
  %s4 = inlined_call_operand.vmem [shape: f32[64,64], index: 4, kind: input, shape index: {}]
  %s5 = inlined_call_operand.vmem [shape: f32[64,64], index: 5, kind: input, shape index: {}]
  %s6 = inlined_call_operand.hbm [shape: f32[64,64], index: 6, kind: input, shape index: {}]
  %s7 = inlined_call_operand.vmem [shape: f32[1,64], index: 7, kind: input, shape index: {}]
  %s8 = inlined_call_operand.vmem [shape: f32[1,64], index: 8, kind: input, shape index: {}]
  %s9 = inlined_call_operand.vmem [shape: f32[1,64], index: 9, kind: input, shape index: {}]
  %s10 = inlined_call_operand.vmem [shape: f32[1,64], index: 10, kind: input, shape index: {}]
  %s11 = inlined_call_operand.vmem [shape: f32[1,64], index: 11, kind: input, shape index: {}]
  %s12 = inlined_call_operand.vmem [shape: f32[1,64], index: 12, kind: input, shape index: {}]
  %s13 = inlined_call_operand.vmem [shape: f32[192,24], index: 13, kind: input, shape index: {}]
  %s14 = inlined_call_operand.vmem [shape: f32[24,192], index: 14, kind: input, shape index: {}]
  %s15 = inlined_call_operand.hbm [shape: f32[24,192], index: 15, kind: output, shape index: {}]
  %s16 = sld [smem:[#allocation0]]
  $region109: #{tpu_custom_call.1} parent=0
    _
  %s18 = ssub.s32 1, %s16
  %s19 = scalar_select 0, %s18, %s16
  $region1: #{tpu_custom_call.1} parent=0
    #allocation7 [shape = 'u8[512]{0}', space=vmem, size = 0x400, scoped, tag = 'input window, operand 0, single buffered']
    #allocation8 [shape = 's32[2]{0}', space=sflag, size = 0x8, scoped, tag = 'scoped memory for tpu_custom_call.1']
    #allocation9 [shape = 's32[2]{0}', space=sflag, size = 0x8, scoped, tag = 'scoped memory for tpu_custom_call.1']
    #allocation10 [shape = 'u8[8192]{0}', space=vmem, size = 0x2000, scoped, tag = 'input window, operand 1']
    #allocation11 [shape = 's32[2]{0}', space=sflag, size = 0x8, scoped, tag = 'scoped memory for tpu_custom_call.1']
    #allocation12 [shape = 'u8[8192]{0}', space=vmem, size = 0x2000, scoped, tag = 'input window, operand 2']
    #allocation13 [shape = 'u8[32768]{0}', space=vmem, size = 0x8000, scoped, tag = 'input window, operand 6, single buffered']
    #allocation14 [shape = 's32[1]{0}', space=sflag, size = 0x4, scoped, tag = 'scoped memory for tpu_custom_call.1']
    #allocation15 [shape = 'u8[16384]{0}', space=vmem, size = 0x4000, scoped, tag = 'output window, operand 0']
    %20 = vsyncpa [#allocation8], 0
    %21 = vsyncpa [#allocation11], 0
    %s22 = scalar_lea.sflag [#allocation11], 1
    %23 = vsyncpa %s22, 0
    %24 = vsyncpa [#allocation14], 0
    %25 = vsyncpa [#allocation9], 0
    %s26 = scalar_lea.sflag [#allocation9], 1
    %27 = vsyncpa %s26, 0
    loop: start=0, step=1, limit=5
    $region2: #{tpu_custom_call.1} parent=1 // loop_pre_header
      _
    $region3: #{tpu_custom_call.1} parent=1 // loop_header
      %s29 = sphi 0, %s33
      %p30 = scmp.ge.s32.totalorder %s29, 5
      %s37 = sphi 0, %s37
      %s39 = sphi 0, %s37
      %s40 = sphi 0, %s39
      %s54 = sphi 0, %s40
      %s60 = sphi 0, %s62
      %s63 = sphi 0, %s60
      %s64 = sphi 0, %s63
      %s80 = sphi 0, %s64
      %s86 = sphi 0, %s88
      %s89 = sphi 0, %s86
      %s90 = sphi 0, %s89
      %s106 = sphi 0, %s90
      %s110 = sphi 0, %s110
      %s112 = sphi 0, %s110
      %s113 = sphi 0, %s112
      %s127 = sphi 0, %s113
      %s131 = sphi 0, %s131
      %s133 = sphi 0, %s131
      %s134 = sphi 0, %s133
      %s148 = sphi 0, %s134
      %s152 = sphi 0, %s152
      %s154 = sphi 0, %s152
      %s155 = sphi 0, %s154
      %s169 = sphi 0, %s155
      %s173 = sphi 0, %s173
      %s175 = sphi 0, %s173
      %s176 = sphi 0, %s175
      %s190 = sphi 0, %s176
      %s194 = sphi 0, %s194
      %s196 = sphi 0, %s194
      %s197 = sphi 0, %s196
      %s211 = sphi 0, %s197
      %s215 = sphi 0, %s215
      %s217 = sphi 0, %s215
      %s218 = sphi 0, %s217
      %s232 = sphi 0, %s218
      %s236 = sphi 0, %s236
      %s238 = sphi 0, %s236
      %s239 = sphi 0, %s238
      %s253 = sphi 0, %s239
      %s257 = sphi 0, %s257
      %s259 = sphi 0, %s257
      %s260 = sphi 0, %s259
      %s274 = sphi 0, %s260
      %s278 = sphi 0, %s278
      %s280 = sphi 0, %s278
      %s281 = sphi 0, %s280
      %s295 = sphi 0, %s281
      %s299 = sphi 0, %s299
      %s301 = sphi 0, %s299
      %s302 = sphi 0, %s301
      %s316 = sphi 0, %s302
      %s320 = sphi 0, %s320
      %s322 = sphi 0, %s320
      %s323 = sphi 0, %s322
      %s337 = sphi 0, %s323
      %s341 = sphi 0, %s341
      %s343 = sphi 0, %s341
      %s344 = sphi 0, %s343
      %s358 = sphi 0, %s344
      %s364 = sphi 0, %s366
      %s367 = sphi 0, %s364
      %s368 = sphi 0, %s367
      %s384 = sphi 0, %s368
    $region4: #{tpu_custom_call.1} parent=1 // loop_header_branch
      %32 = sbr.rel (%p30) target = $region8
    $region5: #{tpu_custom_call.1} parent=1 // loop_body
      %s34 = ssub.s32 %s29, 1
      %s35 = ssub.s32 %s29, 2
      %s36 = sadd.s32 %s29, 1
      %s38 = sadd.s32 %s37, 1
      %p41 = scmp.eq.s32.totalorder %s29, 2
      %p42 = scmp.ne.s32.totalorder %s37, %s39
      %p43 = scmp.eq.s32.totalorder %s29, 0
      %p44 = por %p42, %p43
      %p45 = scmp.ne.s32.totalorder %s37, %s39
      %p46 = scmp.eq.s32.totalorder %s34, 2
      %p47 = por %p45, %p46
      %p48 = scmp.ne.s32.totalorder %s39, %s40
      %p49 = scmp.eq.s32.totalorder %s34, 0
      %p50 = por %p48, %p49
      %p51 = scmp.ne.s32.totalorder %s39, %s40
      %p52 = scmp.eq.s32.totalorder %s35, 2
      %p53 = por %p51, %p52
      %p55 = scmp.ne.s32.totalorder %s40, %s54
      %p56 = scmp.eq.s32.totalorder %s35, 0
      %p57 = por %p55, %p56
      %s58 = ssub.s32 %s29, %s36
      %p59 = scmp.eq.s32.totalorder %s58, 0
      %s61 = sadd.s32 %s60, 1
      %s62 = scalar_select %p59, %s60, %s61
      %p65 = pneg %p59
      %p66 = scmp.eq.s32.totalorder %s29, 2
      %p67 = por %p65, %p66
      %p68 = scmp.ne.s32.totalorder %s60, %s63
      %p69 = scmp.eq.s32.totalorder %s29, 0
      %p70 = por %p68, %p69
      %p71 = scmp.ne.s32.totalorder %s60, %s63
      %p72 = scmp.eq.s32.totalorder %s34, 2
      %p73 = por %p71, %p72
      %p74 = scmp.ne.s32.totalorder %s63, %s64
      %p75 = scmp.eq.s32.totalorder %s34, 0
      %p76 = por %p74, %p75
      %p77 = scmp.ne.s32.totalorder %s63, %s64
      %p78 = scmp.eq.s32.totalorder %s35, 2
      %p79 = por %p77, %p78
      %p81 = scmp.ne.s32.totalorder %s64, %s80
      %p82 = scmp.eq.s32.totalorder %s35, 0
      %p83 = por %p81, %p82
      %s84 = ssub.s32 %s29, %s36
      %p85 = scmp.eq.s32.totalorder %s84, 0
      %s87 = sadd.s32 %s86, 1
      %s88 = scalar_select %p85, %s86, %s87
      %p91 = pneg %p85
      %p92 = scmp.eq.s32.totalorder %s29, 2
      %p93 = por %p91, %p92
      %p94 = scmp.ne.s32.totalorder %s86, %s89
      %p95 = scmp.eq.s32.totalorder %s29, 0
      %p96 = por %p94, %p95
      %p97 = scmp.ne.s32.totalorder %s86, %s89
      %p98 = scmp.eq.s32.totalorder %s34, 2
      %p99 = por %p97, %p98
      %p100 = scmp.ne.s32.totalorder %s89, %s90
      %p101 = scmp.eq.s32.totalorder %s34, 0
      %p102 = por %p100, %p101
      %p103 = scmp.ne.s32.totalorder %s89, %s90
      %p104 = scmp.eq.s32.totalorder %s35, 2
      %p105 = por %p103, %p104
      %p107 = scmp.ne.s32.totalorder %s90, %s106
      %p108 = scmp.eq.s32.totalorder %s35, 0
      %p109 = por %p107, %p108
      %s111 = sadd.s32 %s110, 1
      %p114 = scmp.eq.s32.totalorder %s29, 2
      %p115 = scmp.ne.s32.totalorder %s110, %s112
      %p116 = scmp.eq.s32.totalorder %s29, 0
      %p117 = por %p115, %p116
      %p118 = scmp.ne.s32.totalorder %s110, %s112
      %p119 = scmp.eq.s32.totalorder %s34, 2
      %p120 = por %p118, %p119
      %p121 = scmp.ne.s32.totalorder %s112, %s113
      %p122 = scmp.eq.s32.totalorder %s34, 0
      %p123 = por %p121, %p122
      %p124 = scmp.ne.s32.totalorder %s112, %s113
      %p125 = scmp.eq.s32.totalorder %s35, 2
      %p126 = por %p124, %p125
      %p128 = scmp.ne.s32.totalorder %s113, %s127
      %p129 = scmp.eq.s32.totalorder %s35, 0
      %p130 = por %p128, %p129
      %s132 = sadd.s32 %s131, 1
      %p135 = scmp.eq.s32.totalorder %s29, 2
      %p136 = scmp.ne.s32.totalorder %s131, %s133
      %p137 = scmp.eq.s32.totalorder %s29, 0
      %p138 = por %p136, %p137
      %p139 = scmp.ne.s32.totalorder %s131, %s133
      %p140 = scmp.eq.s32.totalorder %s34, 2
      %p141 = por %p139, %p140
      %p142 = scmp.ne.s32.totalorder %s133, %s134
      %p143 = scmp.eq.s32.totalorder %s34, 0
      %p144 = por %p142, %p143
      %p145 = scmp.ne.s32.totalorder %s133, %s134
      %p146 = scmp.eq.s32.totalorder %s35, 2
      %p147 = por %p145, %p146
      %p149 = scmp.ne.s32.totalorder %s134, %s148
      %p150 = scmp.eq.s32.totalorder %s35, 0
      %p151 = por %p149, %p150
      %s153 = sadd.s32 %s152, 1
      %p156 = scmp.eq.s32.totalorder %s29, 2
      %p157 = scmp.ne.s32.totalorder %s152, %s154
      %p158 = scmp.eq.s32.totalorder %s29, 0
      %p159 = por %p157, %p158
      %p160 = scmp.ne.s32.totalorder %s152, %s154
      %p161 = scmp.eq.s32.totalorder %s34, 2
      %p162 = por %p160, %p161
      %p163 = scmp.ne.s32.totalorder %s154, %s155
      %p164 = scmp.eq.s32.totalorder %s34, 0
      %p165 = por %p163, %p164
      %p166 = scmp.ne.s32.totalorder %s154, %s155
      %p167 = scmp.eq.s32.totalorder %s35, 2
      %p168 = por %p166, %p167
      %p170 = scmp.ne.s32.totalorder %s155, %s169
      %p171 = scmp.eq.s32.totalorder %s35, 0
      %p172 = por %p170, %p171
      %s174 = sadd.s32 %s173, 1
      %p177 = scmp.eq.s32.totalorder %s29, 2
      %p178 = scmp.ne.s32.totalorder %s173, %s175
      %p179 = scmp.eq.s32.totalorder %s29, 0
      %p180 = por %p178, %p179
      %p181 = scmp.ne.s32.totalorder %s173, %s175
      %p182 = scmp.eq.s32.totalorder %s34, 2
      %p183 = por %p181, %p182
      %p184 = scmp.ne.s32.totalorder %s175, %s176
      %p185 = scmp.eq.s32.totalorder %s34, 0
      %p186 = por %p184, %p185
      %p187 = scmp.ne.s32.totalorder %s175, %s176
      %p188 = scmp.eq.s32.totalorder %s35, 2
      %p189 = por %p187, %p188
      %p191 = scmp.ne.s32.totalorder %s176, %s190
      %p192 = scmp.eq.s32.totalorder %s35, 0
      %p193 = por %p191, %p192
      %s195 = sadd.s32 %s194, 1
      %p198 = scmp.eq.s32.totalorder %s29, 2
      %p199 = scmp.ne.s32.totalorder %s194, %s196
      %p200 = scmp.eq.s32.totalorder %s29, 0
      %p201 = por %p199, %p200
      %p202 = scmp.ne.s32.totalorder %s194, %s196
      %p203 = scmp.eq.s32.totalorder %s34, 2
      %p204 = por %p202, %p203
      %p205 = scmp.ne.s32.totalorder %s196, %s197
      %p206 = scmp.eq.s32.totalorder %s34, 0
      %p207 = por %p205, %p206
      %p208 = scmp.ne.s32.totalorder %s196, %s197
      %p209 = scmp.eq.s32.totalorder %s35, 2
      %p210 = por %p208, %p209
      %p212 = scmp.ne.s32.totalorder %s197, %s211
      %p213 = scmp.eq.s32.totalorder %s35, 0
      %p214 = por %p212, %p213
      %s216 = sadd.s32 %s215, 1
      %p219 = scmp.eq.s32.totalorder %s29, 2
      %p220 = scmp.ne.s32.totalorder %s215, %s217
      %p221 = scmp.eq.s32.totalorder %s29, 0
      %p222 = por %p220, %p221
      %p223 = scmp.ne.s32.totalorder %s215, %s217
      %p224 = scmp.eq.s32.totalorder %s34, 2
      %p225 = por %p223, %p224
      %p226 = scmp.ne.s32.totalorder %s217, %s218
      %p227 = scmp.eq.s32.totalorder %s34, 0
      %p228 = por %p226, %p227
      %p229 = scmp.ne.s32.totalorder %s217, %s218
      %p230 = scmp.eq.s32.totalorder %s35, 2
      %p231 = por %p229, %p230
      %p233 = scmp.ne.s32.totalorder %s218, %s232
      %p234 = scmp.eq.s32.totalorder %s35, 0
      %p235 = por %p233, %p234
      %s237 = sadd.s32 %s236, 1
      %p240 = scmp.eq.s32.totalorder %s29, 2
      %p241 = scmp.ne.s32.totalorder %s236, %s238
      %p242 = scmp.eq.s32.totalorder %s29, 0
      %p243 = por %p241, %p242
      %p244 = scmp.ne.s32.totalorder %s236, %s238
      %p245 = scmp.eq.s32.totalorder %s34, 2
      %p246 = por %p244, %p245
      %p247 = scmp.ne.s32.totalorder %s238, %s239
      %p248 = scmp.eq.s32.totalorder %s34, 0
      %p249 = por %p247, %p248
      %p250 = scmp.ne.s32.totalorder %s238, %s239
      %p251 = scmp.eq.s32.totalorder %s35, 2
      %p252 = por %p250, %p251
      %p254 = scmp.ne.s32.totalorder %s239, %s253
      %p255 = scmp.eq.s32.totalorder %s35, 0
      %p256 = por %p254, %p255
      %s258 = sadd.s32 %s257, 1
      %p261 = scmp.eq.s32.totalorder %s29, 2
      %p262 = scmp.ne.s32.totalorder %s257, %s259
      %p263 = scmp.eq.s32.totalorder %s29, 0
      %p264 = por %p262, %p263
      %p265 = scmp.ne.s32.totalorder %s257, %s259
      %p266 = scmp.eq.s32.totalorder %s34, 2
      %p267 = por %p265, %p266
      %p268 = scmp.ne.s32.totalorder %s259, %s260
      %p269 = scmp.eq.s32.totalorder %s34, 0
      %p270 = por %p268, %p269
      %p271 = scmp.ne.s32.totalorder %s259, %s260
      %p272 = scmp.eq.s32.totalorder %s35, 2
      %p273 = por %p271, %p272
      %p275 = scmp.ne.s32.totalorder %s260, %s274
      %p276 = scmp.eq.s32.totalorder %s35, 0
      %p277 = por %p275, %p276
      %s279 = sadd.s32 %s278, 1
      %p282 = scmp.eq.s32.totalorder %s29, 2
      %p283 = scmp.ne.s32.totalorder %s278, %s280
      %p284 = scmp.eq.s32.totalorder %s29, 0
      %p285 = por %p283, %p284
      %p286 = scmp.ne.s32.totalorder %s278, %s280
      %p287 = scmp.eq.s32.totalorder %s34, 2
      %p288 = por %p286, %p287
      %p289 = scmp.ne.s32.totalorder %s280, %s281
      %p290 = scmp.eq.s32.totalorder %s34, 0
      %p291 = por %p289, %p290
      %p292 = scmp.ne.s32.totalorder %s280, %s281
      %p293 = scmp.eq.s32.totalorder %s35, 2
      %p294 = por %p292, %p293
      %p296 = scmp.ne.s32.totalorder %s281, %s295
      %p297 = scmp.eq.s32.totalorder %s35, 0
      %p298 = por %p296, %p297
      %s300 = sadd.s32 %s299, 1
      %p303 = scmp.eq.s32.totalorder %s29, 2
      %p304 = scmp.ne.s32.totalorder %s299, %s301
      %p305 = scmp.eq.s32.totalorder %s29, 0
      %p306 = por %p304, %p305
      %p307 = scmp.ne.s32.totalorder %s299, %s301
      %p308 = scmp.eq.s32.totalorder %s34, 2
      %p309 = por %p307, %p308
      %p310 = scmp.ne.s32.totalorder %s301, %s302
      %p311 = scmp.eq.s32.totalorder %s34, 0
      %p312 = por %p310, %p311
      %p313 = scmp.ne.s32.totalorder %s301, %s302
      %p314 = scmp.eq.s32.totalorder %s35, 2
      %p315 = por %p313, %p314
      %p317 = scmp.ne.s32.totalorder %s302, %s316
      %p318 = scmp.eq.s32.totalorder %s35, 0
      %p319 = por %p317, %p318
      %s321 = sadd.s32 %s320, 1
      %p324 = scmp.eq.s32.totalorder %s29, 2
      %p325 = scmp.ne.s32.totalorder %s320, %s322
      %p326 = scmp.eq.s32.totalorder %s29, 0
      %p327 = por %p325, %p326
      %p328 = scmp.ne.s32.totalorder %s320, %s322
      %p329 = scmp.eq.s32.totalorder %s34, 2
      %p330 = por %p328, %p329
      %p331 = scmp.ne.s32.totalorder %s322, %s323
      %p332 = scmp.eq.s32.totalorder %s34, 0
      %p333 = por %p331, %p332
      %p334 = scmp.ne.s32.totalorder %s322, %s323
      %p335 = scmp.eq.s32.totalorder %s35, 2
      %p336 = por %p334, %p335
      %p338 = scmp.ne.s32.totalorder %s323, %s337
      %p339 = scmp.eq.s32.totalorder %s35, 0
      %p340 = por %p338, %p339
      %s342 = sadd.s32 %s341, 1
      %p345 = scmp.eq.s32.totalorder %s29, 2
      %p346 = scmp.ne.s32.totalorder %s341, %s343
      %p347 = scmp.eq.s32.totalorder %s29, 0
      %p348 = por %p346, %p347
      %p349 = scmp.ne.s32.totalorder %s341, %s343
      %p350 = scmp.eq.s32.totalorder %s34, 2
      %p351 = por %p349, %p350
      %p352 = scmp.ne.s32.totalorder %s343, %s344
      %p353 = scmp.eq.s32.totalorder %s34, 0
      %p354 = por %p352, %p353
      %p355 = scmp.ne.s32.totalorder %s343, %s344
      %p356 = scmp.eq.s32.totalorder %s35, 2
      %p357 = por %p355, %p356
      %p359 = scmp.ne.s32.totalorder %s344, %s358
      %p360 = scmp.eq.s32.totalorder %s35, 0
      %p361 = por %p359, %p360
      %s362 = ssub.s32 %s29, %s36
      %p363 = scmp.eq.s32.totalorder %s362, 0
      %s365 = sadd.s32 %s364, 1
      %s366 = scalar_select %p363, %s364, %s365
      %p369 = pneg %p363
      %p370 = scmp.eq.s32.totalorder %s29, 2
      %p371 = por %p369, %p370
      %p372 = scmp.ne.s32.totalorder %s364, %s367
      %p373 = scmp.eq.s32.totalorder %s29, 0
      %p374 = por %p372, %p373
      %p375 = scmp.ne.s32.totalorder %s364, %s367
      %p376 = scmp.eq.s32.totalorder %s34, 2
      %p377 = por %p375, %p376
      %p378 = scmp.ne.s32.totalorder %s367, %s368
      %p379 = scmp.eq.s32.totalorder %s34, 0
      %p380 = por %p378, %p379
      %p381 = scmp.ne.s32.totalorder %s367, %s368
      %p382 = scmp.eq.s32.totalorder %s35, 2
      %p383 = por %p381, %p382
      %p385 = scmp.ne.s32.totalorder %s368, %s384
      %p386 = scmp.eq.s32.totalorder %s35, 0
      %p387 = por %p385, %p386
      %p388 = scmp.le.s32.totalorder 1, %s29
      %p389 = scmp.lt.s32.totalorder %s29, 4
      %p390 = pnand %p388, %p389
      %p391 = pneg %p390
      // Predicated region
      $region9: #{tpu_custom_call.1} parent=5 // pred_check
        _
      $region10: #{tpu_custom_call.1} parent=5 // pred_check_branch
        %393 = sbr.rel (%p390) target = $region12
      $region11: #{tpu_custom_call.1} parent=5 // pred_region
        %s394 = ssub.s32 %s29, 1
        // Predicated region
        $region13: #{tpu_custom_call.1} parent=11 // pred_check
          %p395 = pneg %p50
        $region14: #{tpu_custom_call.1} parent=11 // pred_check_branch
          %397 = sbr.rel (%p395) target = $region16
        $region15: #{tpu_custom_call.1} parent=11 // pred_region
          %s399 = ssub.s32 16, 16
          %400 = vsyncadd [#allocation8], %s399
          %s402 = sshll.u32 [#allocation7], 4
          %s403 = int_to_ptr.vmem [resolvable:$true] %s402
          %405 = dma.hbm_to_vmem [thread:$0]  %s0, 16, %s403, [#allocation8]
        $region16: #{tpu_custom_call.1} parent=11 // pred_fallthru
          _
        // Predicated region
        $region17: #{tpu_custom_call.1} parent=11 // pred_check
          %p406 = pneg %p123
        $region18: #{tpu_custom_call.1} parent=11 // pred_check_branch
          %408 = sbr.rel (%p406) target = $region20
        $region19: #{tpu_custom_call.1} parent=11 // pred_region
          _
        $region20: #{tpu_custom_call.1} parent=11 // pred_fallthru
          _
        // Predicated region
        $region21: #{tpu_custom_call.1} parent=11 // pred_check
          %p409 = pneg %p144
        $region22: #{tpu_custom_call.1} parent=11 // pred_check_branch
          %411 = sbr.rel (%p409) target = $region24
        $region23: #{tpu_custom_call.1} parent=11 // pred_region
          _
        $region24: #{tpu_custom_call.1} parent=11 // pred_fallthru
          _
        // Predicated region
        $region25: #{tpu_custom_call.1} parent=11 // pred_check
          %p412 = pneg %p165
        $region26: #{tpu_custom_call.1} parent=11 // pred_check_branch
          %414 = sbr.rel (%p412) target = $region28
        $region27: #{tpu_custom_call.1} parent=11 // pred_region
          _
        $region28: #{tpu_custom_call.1} parent=11 // pred_fallthru
          _
        // Predicated region
        $region29: #{tpu_custom_call.1} parent=11 // pred_check
          %p415 = pneg %p186
        $region30: #{tpu_custom_call.1} parent=11 // pred_check_branch
          %417 = sbr.rel (%p415) target = $region32
        $region31: #{tpu_custom_call.1} parent=11 // pred_region
          %s419 = ssub.s32 1024, 1024
          %420 = vsyncadd [#allocation14], %s419
          %s421 = sshll.u32 [#allocation13], 4
          %s422 = int_to_ptr.vmem [resolvable:$true] %s421
          %427 = dma.hbm_to_vmem [thread:$0]  %s6, 1024, %s422, [#allocation14], 128, 128, 8
        $region32: #{tpu_custom_call.1} parent=11 // pred_fallthru
          _
        // Predicated region
        $region33: #{tpu_custom_call.1} parent=11 // pred_check
          %p428 = pneg %p207
        $region34: #{tpu_custom_call.1} parent=11 // pred_check_branch
          %430 = sbr.rel (%p428) target = $region36
        $region35: #{tpu_custom_call.1} parent=11 // pred_region
          _
        $region36: #{tpu_custom_call.1} parent=11 // pred_fallthru
          _
        // Predicated region
        $region37: #{tpu_custom_call.1} parent=11 // pred_check
          %p431 = pneg %p228
        $region38: #{tpu_custom_call.1} parent=11 // pred_check_branch
          %433 = sbr.rel (%p431) target = $region40
        $region39: #{tpu_custom_call.1} parent=11 // pred_region
          _
        $region40: #{tpu_custom_call.1} parent=11 // pred_fallthru
          _
        // Predicated region
        $region41: #{tpu_custom_call.1} parent=11 // pred_check
          %p434 = pneg %p249
        $region42: #{tpu_custom_call.1} parent=11 // pred_check_branch
          %436 = sbr.rel (%p434) target = $region44
        $region43: #{tpu_custom_call.1} parent=11 // pred_region
          _
        $region44: #{tpu_custom_call.1} parent=11 // pred_fallthru
          _
        // Predicated region
        $region45: #{tpu_custom_call.1} parent=11 // pred_check
          %p437 = pneg %p270
        $region46: #{tpu_custom_call.1} parent=11 // pred_check_branch
          %439 = sbr.rel (%p437) target = $region48
        $region47: #{tpu_custom_call.1} parent=11 // pred_region
          _
        $region48: #{tpu_custom_call.1} parent=11 // pred_fallthru
          _
        // Predicated region
        $region49: #{tpu_custom_call.1} parent=11 // pred_check
          %p440 = pneg %p291
        $region50: #{tpu_custom_call.1} parent=11 // pred_check_branch
          %442 = sbr.rel (%p440) target = $region52
        $region51: #{tpu_custom_call.1} parent=11 // pred_region
          _
        $region52: #{tpu_custom_call.1} parent=11 // pred_fallthru
          _
        // Predicated region
        $region53: #{tpu_custom_call.1} parent=11 // pred_check
          %p443 = pneg %p312
        $region54: #{tpu_custom_call.1} parent=11 // pred_check_branch
          %445 = sbr.rel (%p443) target = $region56
        $region55: #{tpu_custom_call.1} parent=11 // pred_region
          _
        $region56: #{tpu_custom_call.1} parent=11 // pred_fallthru
          _
        // Predicated region
        $region57: #{tpu_custom_call.1} parent=11 // pred_check
          %p446 = pneg %p333
        $region58: #{tpu_custom_call.1} parent=11 // pred_check_branch
          %448 = sbr.rel (%p446) target = $region60
        $region59: #{tpu_custom_call.1} parent=11 // pred_region
          _
        $region60: #{tpu_custom_call.1} parent=11 // pred_fallthru
          _
        // Predicated region
        $region61: #{tpu_custom_call.1} parent=11 // pred_check
          %p449 = pneg %p354
        $region62: #{tpu_custom_call.1} parent=11 // pred_check_branch
          %451 = sbr.rel (%p449) target = $region64
        $region63: #{tpu_custom_call.1} parent=11 // pred_region
          _
        $region64: #{tpu_custom_call.1} parent=11 // pred_fallthru
          _
      $region12: #{tpu_custom_call.1} parent=5 // pred_fallthru
        _
      %p452 = scmp.lt.s32.totalorder %s29, 3
      // Predicated region
      $region65: #{tpu_custom_call.1} parent=5 // pred_check
        %p453 = pneg %p452
      $region66: #{tpu_custom_call.1} parent=5 // pred_check_branch
        %455 = sbr.rel (%p453) target = $region68
      $region67: #{tpu_custom_call.1} parent=5 // pred_region
        // Predicated region
        $region69: #{tpu_custom_call.1} parent=67 // pred_check
          %p456 = pneg %p70
        $region70: #{tpu_custom_call.1} parent=67 // pred_check_branch
          %458 = sbr.rel (%p456) target = $region72
        $region71: #{tpu_custom_call.1} parent=67 // pred_region
          %s459 = sand.u32 %s29, 1
          %s460 = scalar_lea.sflag [#allocation11], %s459
          %s461 = sand.u32 %s60, 1
          %s462 = smul.addr %s461, 8
          %s463 = scalar_lea.vmem [#allocation10], %s462
          %s465 = ssub.s32 128, 128
          %466 = vsyncadd %s460, %s465
          %s467 = smul.addr %s29, 128
          %s468 = scalar_lea.hbm %s1, %s467
          %s470 = sshll.u32 %s463, 4
          %s471 = int_to_ptr.vmem [resolvable:$true] %s470
          %473 = dma.hbm_to_vmem [thread:$0]  %s468, 128, %s471, %s460
        $region72: #{tpu_custom_call.1} parent=67 // pred_fallthru
          _
        // Predicated region
        $region73: #{tpu_custom_call.1} parent=67 // pred_check
          %p474 = pneg %p96
        $region74: #{tpu_custom_call.1} parent=67 // pred_check_branch
          %476 = sbr.rel (%p474) target = $region76
        $region75: #{tpu_custom_call.1} parent=67 // pred_region
          %s477 = sand.u32 %s29, 1
          %s478 = scalar_lea.sflag [#allocation11], %s477
          %s479 = sand.u32 %s86, 1
          %s480 = smul.addr %s479, 8
          %s481 = scalar_lea.vmem [#allocation12], %s480
          %s483 = ssub.s32 128, 128
          %484 = vsyncadd %s478, %s483
          %s485 = smul.addr %s29, 128
          %s486 = scalar_lea.hbm %s2, %s485
          %s488 = sshll.u32 %s481, 4
          %s489 = int_to_ptr.vmem [resolvable:$true] %s488
          %491 = dma.hbm_to_vmem [thread:$0]  %s486, 128, %s489, %s478
        $region76: #{tpu_custom_call.1} parent=67 // pred_fallthru
          _
      $region68: #{tpu_custom_call.1} parent=5 // pred_fallthru
        _
      %p492 = scmp.le.s32.totalorder 1, %s29
      %p493 = scmp.lt.s32.totalorder %s29, 4
      %p494 = pnand %p492, %p493
      %p495 = pneg %p494
      // Predicated region
      $region77: #{tpu_custom_call.1} parent=5 // pred_check
        _
      $region78: #{tpu_custom_call.1} parent=5 // pred_check_branch
        %497 = sbr.rel (%p494) target = $region80
      $region79: #{tpu_custom_call.1} parent=5 // pred_region
        %s498 = ssub.s32 %s29, 1
        // Predicated region
        $region81: #{tpu_custom_call.1} parent=79 // pred_check
          %p499 = pneg %p50
        $region82: #{tpu_custom_call.1} parent=79 // pred_check_branch
          %501 = sbr.rel (%p499) target = $region84
        $region83: #{tpu_custom_call.1} parent=79 // pred_region
          %502 = dma.done [#allocation8], 16
        $region84: #{tpu_custom_call.1} parent=79 // pred_fallthru
          _
        %s503 = sand.u32 %s34, 1
        %s504 = scalar_lea.sflag [#allocation11], %s503
        %s505 = sand.u32 %s63, 1
        %s506 = smul.addr %s505, 8
        %s507 = scalar_lea.vmem [#allocation10], %s506
        // Predicated region
        $region85: #{tpu_custom_call.1} parent=79 // pred_check
          %p508 = pneg %p76
        $region86: #{tpu_custom_call.1} parent=79 // pred_check_branch
          %510 = sbr.rel (%p508) target = $region88
        $region87: #{tpu_custom_call.1} parent=79 // pred_region
          %511 = dma.done %s504, 128
        $region88: #{tpu_custom_call.1} parent=79 // pred_fallthru
          _
        %s512 = sand.u32 %s34, 1
        %s513 = scalar_lea.sflag [#allocation11], %s512
        %s514 = sand.u32 %s89, 1
        %s515 = smul.addr %s514, 8
        %s516 = scalar_lea.vmem [#allocation12], %s515
        // Predicated region
        $region89: #{tpu_custom_call.1} parent=79 // pred_check
          %p517 = pneg %p102
        $region90: #{tpu_custom_call.1} parent=79 // pred_check_branch
          %519 = sbr.rel (%p517) target = $region92
        $region91: #{tpu_custom_call.1} parent=79 // pred_region
          %520 = dma.done %s513, 128
        $region92: #{tpu_custom_call.1} parent=79 // pred_fallthru
          _
        // Predicated region
        $region93: #{tpu_custom_call.1} parent=79 // pred_check
          %p521 = pneg %p186
        $region94: #{tpu_custom_call.1} parent=79 // pred_check_branch
          %523 = sbr.rel (%p521) target = $region96
        $region95: #{tpu_custom_call.1} parent=79 // pred_region
          %524 = dma.done [#allocation14], 1024
        $region96: #{tpu_custom_call.1} parent=79 // pred_fallthru
          _
        %p525 = pneg %p50
        %p526 = pneg %p47
        %s527 = sand.u32 %s34, 1
        %s528 = scalar_lea.sflag [#allocation11], %s527
        %s529 = sand.u32 %s63, 1
        %s530 = smul.addr %s529, 8
        %s531 = scalar_lea.vmem [#allocation10], %s530
        %p532 = pneg %p76
        %p533 = pneg %p73
        %s534 = sand.u32 %s34, 1
        %s535 = scalar_lea.sflag [#allocation11], %s534
        %s536 = sand.u32 %s89, 1
        %s537 = smul.addr %s536, 8
        %s538 = scalar_lea.vmem [#allocation12], %s537
        %p539 = pneg %p102
        %p540 = pneg %p99
        %p541 = pneg %p123
        %p542 = pneg %p120
        %p543 = pneg %p144
        %p544 = pneg %p141
        %p545 = pneg %p165
        %p546 = pneg %p162
        %p547 = pneg %p186
        %p548 = pneg %p183
        %p549 = pneg %p207
        %p550 = pneg %p204
        %p551 = pneg %p228
        %p552 = pneg %p225
        %p553 = pneg %p249
        %p554 = pneg %p246
        %p555 = pneg %p270
        %p556 = pneg %p267
        %p557 = pneg %p291
        %p558 = pneg %p288
        %p559 = pneg %p312
        %p560 = pneg %p309
        %p561 = pneg %p333
        %p562 = pneg %p330
        %p563 = pneg %p354
        %p564 = pneg %p351
        %p565 = pneg %p380
        %p566 = pneg %p377
        %s567 = sand.u32 %s367, 1
        %s568 = scalar_lea.sflag [#allocation9], %s567
        %s569 = sand.u32 %s367, 1
        %s570 = smul.addr %s569, 16
        %s571 = scalar_lea.vmem [#allocation15], %s570
        %v572 = vld [vmem:[#allocation7] sm:$0x1]
        %v574 = vlaneseq
        %v575 = vshrl.u32 %v574, 7
        %v576 = vsub.s32 0, %v575
        %v577 = vrot.slane %v572, %v576
        %vm579 = vcmask 523264
        %580 = vst.msk [vmem:[#allocation2] sm:$0xff] %vm579, %v577
        %v581 = vld [vmem:[%s507] sm:$0xff]
        %582 = vst.msk [vmem:[#allocation2 + $0x8] sm:$0xff] %vm579, %v581
        %v583 = vld [vmem:[%s516] sm:$0xff]
        %584 = vst.msk [vmem:[#allocation2 + $0x10] sm:$0xff] %vm579, %v583
        %v585 = vld [vmem:[#allocation2] sm:$0xff]
        %v586 = vld [vmem:[#allocation2 + $0x8] sm:$0xff]
        %v587 = vld [vmem:[#allocation2 + $0x10] sm:$0xff]
        %v588 = vld [vmem:[%s3] sm:$0xff]
        %v589 = vld [vmem:[%s3 + $0x8] sm:$0xff]
        %v590 = vld [vmem:[%s3 + $0x10] sm:$0xff]
        %v591 = vld [vmem:[%s3 + $0x18] sm:$0xff]
        %v592 = vld [vmem:[%s3 + $0x20] sm:$0xff]
        %v593 = vld [vmem:[%s3 + $0x28] sm:$0xff]
        %v594 = vld [vmem:[%s3 + $0x30] sm:$0xff]
        %v595 = vld [vmem:[%s3 + $0x38] sm:$0xff]
        %v596 = vld [vmem:[%s7] sm:$0x1]
        %v598 = vlaneseq
        %v599 = vshrl.u32 %v598, 7
        %v600 = vsub.s32 0, %v599
        %v601 = vrot.slane %v596, %v600
        %v604 = vsel %vm579, %v585, 0
        %v607 = vsel %vm579, %v586, 0
        %v610 = vsel %vm579, %v587, 0
        %612 = vmatprep.subr.mxu0 0.0
        %613 = vmatpush1.msra.mxu0 0.0
        %614 = vmatprep.subr.mxu0 0.0
        %615 = vmatpush1.msra.mxu0 0.0
        %616 = vmatprep.subr.mxu0 0.0
        %617 = vmatpush1.msra.mxu0 0.0
        %618 = vmatprep.subr.mxu0 0.0
        %619 = vmatpush1.msra.mxu0 0.0
        %620 = vmatprep.subr.mxu0 0.0
        %621 = vmatpush1.msra.mxu0 0.0
        %622 = vmatprep.subr.mxu0 0.0
        %623 = vmatpush1.msra.mxu0 0.0
        %624 = vmatprep.subr.mxu0 0.0
        %625 = vmatpush1.msra.mxu0 0.0
        %626 = vmatprep.subr.mxu0 0.0
        %627 = vmatpush1.msra.mxu0 0.0
        %628 = vmatprep.subr.mxu0 0.0
        %629 = vmatpush1.msra.mxu0 %v595
        %630 = vmatprep.subr.mxu0 0.0
        %631 = vmatpush1.msra.mxu0 %v594
        %632 = vmatprep.subr.mxu0 0.0
        %633 = vmatpush1.msra.mxu0 %v593
        %634 = vmatprep.subr.mxu0 0.0
        %635 = vmatpush1.msra.mxu0 %v592
        %636 = vmatprep.subr.mxu0 0.0
        %637 = vmatpush1.msra.mxu0 %v591
        %638 = vmatprep.subr.mxu0 0.0
        %639 = vmatpush1.msra.mxu0 %v590
        %640 = vmatprep.subr.mxu0 0.0
        %641 = vmatpush1.msra.mxu0 %v589
        %642 = vmatprep.subr.mxu0 0.0
        %643 = vmatpush1.msra.mxu0 %v588
        %644 = vmatprep.subr.mxu0 0.0
        %645 = vmatpush2.msra.mxu0 0.0
        %646 = vmatprep.subr.mxu0 0.0
        %647 = vmatpush2.msra.mxu0 0.0
        %648 = vmatprep.subr.mxu0 0.0
        %649 = vmatpush2.msra.mxu0 0.0
        %650 = vmatprep.subr.mxu0 0.0
        %651 = vmatpush2.msra.mxu0 0.0
        %652 = vmatprep.subr.mxu0 0.0
        %653 = vmatpush2.msra.mxu0 0.0
        %654 = vmatprep.subr.mxu0 0.0
        %655 = vmatpush2.msra.mxu0 0.0
        %656 = vmatprep.subr.mxu0 0.0
        %657 = vmatpush2.msra.mxu0 0.0
        %658 = vmatprep.subr.mxu0 0.0
        %659 = vmatpush2.msra.mxu0 0.0
        %660 = vmatprep.subr.mxu0 0.0
        %661 = vmatpush2.msra.mxu0 0.0
        %662 = vmatprep.subr.mxu0 0.0
        %663 = vmatpush2.msra.mxu0 0.0
        %664 = vmatprep.subr.mxu0 0.0
        %665 = vmatpush2.msra.mxu0 0.0
        %666 = vmatprep.subr.mxu0 0.0
        %667 = vmatpush2.msra.mxu0 0.0
        %668 = vmatprep.subr.mxu0 0.0
        %669 = vmatpush2.msra.mxu0 0.0
        %670 = vmatprep.subr.mxu0 0.0
        %671 = vmatpush2.msra.mxu0 0.0
        %672 = vmatprep.subr.mxu0 0.0
        %673 = vmatpush2.msra.mxu0 0.0
        %674 = vmatprep.subr.mxu0 0.0
        %675 = vmatpush2.msra.mxu0 0.0
        %676 = vmatprep.mubr.f32.mxu0 0.0
        %677 = vmatmul.mubr.f32.gmra.mxu0 %v604
        %v678 = vpop.f32.mrf.mxu0
        %v679 = vadd.f32 %v601, %v678
        %v680 = vpop.f32.mrf.mxu0
        %681 = vmatprep.mubr.f32.mxu0 0.0
        %682 = vmatmul.mubr.f32.gmra.mxu0 %v607
        %v683 = vpop.f32.mrf.mxu0
        %v684 = vadd.f32 %v601, %v683
        %v685 = vpop.f32.mrf.mxu0
        %686 = vmatprep.mubr.f32.mxu0 0.0
        %687 = vmatmul.mubr.f32.gmra.mxu0 %v610
        %v688 = vpop.f32.mrf.mxu0
        %v689 = vadd.f32 %v601, %v688
        %v690 = vpop.f32.mrf.mxu0
        %691 = vdwg.mxu0
        %v692 = vmul.f32 %v679, 0.35355338
        %v693 = vmul.f32 %v684, 0.35355338
        %v694 = vmul.f32 %v689, 0.35355338
        %695 = vst.msk [vmem:[#allocation3] sm:$0xff] %vm579, %v692
        %696 = vst.msk [vmem:[#allocation3 + $0x8] sm:$0xff] %vm579, %v693
        %697 = vst.msk [vmem:[#allocation3 + $0x10] sm:$0xff] %vm579, %v694
        %v698 = vld [vmem:[%s4] sm:$0xff]
        %v699 = vld [vmem:[%s4 + $0x8] sm:$0xff]
        %v700 = vld [vmem:[%s4 + $0x10] sm:$0xff]
        %v701 = vld [vmem:[%s4 + $0x18] sm:$0xff]
        %v702 = vld [vmem:[%s4 + $0x20] sm:$0xff]
        %v703 = vld [vmem:[%s4 + $0x28] sm:$0xff]
        %v704 = vld [vmem:[%s4 + $0x30] sm:$0xff]
        %v705 = vld [vmem:[%s4 + $0x38] sm:$0xff]
        %v706 = vld [vmem:[%s8] sm:$0x1]
        %v708 = vlaneseq
        %v709 = vshrl.u32 %v708, 7
        %v710 = vsub.s32 0, %v709
        %v711 = vrot.slane %v706, %v710
        %713 = vmatprep.subr.mxu0 0.0
        %714 = vmatpush1.msra.mxu0 0.0
        %715 = vmatprep.subr.mxu0 0.0
        %716 = vmatpush1.msra.mxu0 0.0
        %717 = vmatprep.subr.mxu0 0.0
        %718 = vmatpush1.msra.mxu0 0.0
        %719 = vmatprep.subr.mxu0 0.0
        %720 = vmatpush1.msra.mxu0 0.0
        %721 = vmatprep.subr.mxu0 0.0
        %722 = vmatpush1.msra.mxu0 0.0
        %723 = vmatprep.subr.mxu0 0.0
        %724 = vmatpush1.msra.mxu0 0.0
        %725 = vmatprep.subr.mxu0 0.0
        %726 = vmatpush1.msra.mxu0 0.0
        %727 = vmatprep.subr.mxu0 0.0
        %728 = vmatpush1.msra.mxu0 0.0
        %729 = vmatprep.subr.mxu0 0.0
        %730 = vmatpush1.msra.mxu0 %v705
        %731 = vmatprep.subr.mxu0 0.0
        %732 = vmatpush1.msra.mxu0 %v704
        %733 = vmatprep.subr.mxu0 0.0
        %734 = vmatpush1.msra.mxu0 %v703
        %735 = vmatprep.subr.mxu0 0.0
        %736 = vmatpush1.msra.mxu0 %v702
        %737 = vmatprep.subr.mxu0 0.0
        %738 = vmatpush1.msra.mxu0 %v701
        %739 = vmatprep.subr.mxu0 0.0
        %740 = vmatpush1.msra.mxu0 %v700
        %741 = vmatprep.subr.mxu0 0.0
        %742 = vmatpush1.msra.mxu0 %v699
        %743 = vmatprep.subr.mxu0 0.0
        %744 = vmatpush1.msra.mxu0 %v698
        %745 = vmatprep.subr.mxu0 0.0
        %746 = vmatpush2.msra.mxu0 0.0
        %747 = vmatprep.subr.mxu0 0.0
        %748 = vmatpush2.msra.mxu0 0.0
        %749 = vmatprep.subr.mxu0 0.0
        %750 = vmatpush2.msra.mxu0 0.0
        %751 = vmatprep.subr.mxu0 0.0
        %752 = vmatpush2.msra.mxu0 0.0
        %753 = vmatprep.subr.mxu0 0.0
        %754 = vmatpush2.msra.mxu0 0.0
        %755 = vmatprep.subr.mxu0 0.0
        %756 = vmatpush2.msra.mxu0 0.0
        %757 = vmatprep.subr.mxu0 0.0
        %758 = vmatpush2.msra.mxu0 0.0
        %759 = vmatprep.subr.mxu0 0.0
        %760 = vmatpush2.msra.mxu0 0.0
        %761 = vmatprep.subr.mxu0 0.0
        %762 = vmatpush2.msra.mxu0 0.0
        %763 = vmatprep.subr.mxu0 0.0
        %764 = vmatpush2.msra.mxu0 0.0
        %765 = vmatprep.subr.mxu0 0.0
        %766 = vmatpush2.msra.mxu0 0.0
        %767 = vmatprep.subr.mxu0 0.0
        %768 = vmatpush2.msra.mxu0 0.0
        %769 = vmatprep.subr.mxu0 0.0
        %770 = vmatpush2.msra.mxu0 0.0
        %771 = vmatprep.subr.mxu0 0.0
        %772 = vmatpush2.msra.mxu0 0.0
        %773 = vmatprep.subr.mxu0 0.0
        %774 = vmatpush2.msra.mxu0 0.0
        %775 = vmatprep.subr.mxu0 0.0
        %776 = vmatpush2.msra.mxu0 0.0
        %777 = vmatprep.mubr.f32.mxu0 0.0
        %778 = vmatmul.mubr.f32.gmra.mxu0 %v604
        %v779 = vpop.f32.mrf.mxu0
        %v780 = vadd.f32 %v711, %v779
        %v781 = vpop.f32.mrf.mxu0
        %782 = vmatprep.mubr.f32.mxu0 0.0
        %783 = vmatmul.mubr.f32.gmra.mxu0 %v607
        %v784 = vpop.f32.mrf.mxu0
        %v785 = vadd.f32 %v711, %v784
        %v786 = vpop.f32.mrf.mxu0
        %787 = vmatprep.mubr.f32.mxu0 0.0
        %788 = vmatmul.mubr.f32.gmra.mxu0 %v610
        %v789 = vpop.f32.mrf.mxu0
        %v790 = vadd.f32 %v711, %v789
        %v791 = vpop.f32.mrf.mxu0
        %792 = vdwg.mxu0
        %v793 = vld [vmem:[%s5] sm:$0xff]
        %v794 = vld [vmem:[%s5 + $0x8] sm:$0xff]
        %v795 = vld [vmem:[%s5 + $0x10] sm:$0xff]
        %v796 = vld [vmem:[%s5 + $0x18] sm:$0xff]
        %v797 = vld [vmem:[%s5 + $0x20] sm:$0xff]
        %v798 = vld [vmem:[%s5 + $0x28] sm:$0xff]
        %v799 = vld [vmem:[%s5 + $0x30] sm:$0xff]
        %v800 = vld [vmem:[%s5 + $0x38] sm:$0xff]
        %v801 = vld [vmem:[%s9] sm:$0x1]
        %v803 = vlaneseq
        %v804 = vshrl.u32 %v803, 7
        %v805 = vsub.s32 0, %v804
        %v806 = vrot.slane %v801, %v805
        %808 = vmatprep.subr.mxu0 0.0
        %809 = vmatpush1.msra.mxu0 0.0
        %810 = vmatprep.subr.mxu0 0.0
        %811 = vmatpush1.msra.mxu0 0.0
        %812 = vmatprep.subr.mxu0 0.0
        %813 = vmatpush1.msra.mxu0 0.0
        %814 = vmatprep.subr.mxu0 0.0
        %815 = vmatpush1.msra.mxu0 0.0
        %816 = vmatprep.subr.mxu0 0.0
        %817 = vmatpush1.msra.mxu0 0.0
        %818 = vmatprep.subr.mxu0 0.0
        %819 = vmatpush1.msra.mxu0 0.0
        %820 = vmatprep.subr.mxu0 0.0
        %821 = vmatpush1.msra.mxu0 0.0
        %822 = vmatprep.subr.mxu0 0.0
        %823 = vmatpush1.msra.mxu0 0.0
        %824 = vmatprep.subr.mxu0 0.0
        %825 = vmatpush1.msra.mxu0 %v800
        %826 = vmatprep.subr.mxu0 0.0
        %827 = vmatpush1.msra.mxu0 %v799
        %828 = vmatprep.subr.mxu0 0.0
        %829 = vmatpush1.msra.mxu0 %v798
        %830 = vmatprep.subr.mxu0 0.0
        %831 = vmatpush1.msra.mxu0 %v797
        %832 = vmatprep.subr.mxu0 0.0
        %833 = vmatpush1.msra.mxu0 %v796
        %834 = vmatprep.subr.mxu0 0.0
        %835 = vmatpush1.msra.mxu0 %v795
        %836 = vmatprep.subr.mxu0 0.0
        %837 = vmatpush1.msra.mxu0 %v794
        %838 = vmatprep.subr.mxu0 0.0
        %839 = vmatpush1.msra.mxu0 %v793
        %840 = vmatprep.subr.mxu0 0.0
        %841 = vmatpush2.msra.mxu0 0.0
        %842 = vmatprep.subr.mxu0 0.0
        %843 = vmatpush2.msra.mxu0 0.0
        %844 = vmatprep.subr.mxu0 0.0
        %845 = vmatpush2.msra.mxu0 0.0
        %846 = vmatprep.subr.mxu0 0.0
        %847 = vmatpush2.msra.mxu0 0.0
        %848 = vmatprep.subr.mxu0 0.0
        %849 = vmatpush2.msra.mxu0 0.0
        %850 = vmatprep.subr.mxu0 0.0
        %851 = vmatpush2.msra.mxu0 0.0
        %852 = vmatprep.subr.mxu0 0.0
        %853 = vmatpush2.msra.mxu0 0.0
        %854 = vmatprep.subr.mxu0 0.0
        %855 = vmatpush2.msra.mxu0 0.0
        %856 = vmatprep.subr.mxu0 0.0
        %857 = vmatpush2.msra.mxu0 0.0
        %858 = vmatprep.subr.mxu0 0.0
        %859 = vmatpush2.msra.mxu0 0.0
        %860 = vmatprep.subr.mxu0 0.0
        %861 = vmatpush2.msra.mxu0 0.0
        %862 = vmatprep.subr.mxu0 0.0
        %863 = vmatpush2.msra.mxu0 0.0
        %864 = vmatprep.subr.mxu0 0.0
        %865 = vmatpush2.msra.mxu0 0.0
        %866 = vmatprep.subr.mxu0 0.0
        %867 = vmatpush2.msra.mxu0 0.0
        %868 = vmatprep.subr.mxu0 0.0
        %869 = vmatpush2.msra.mxu0 0.0
        %870 = vmatprep.subr.mxu0 0.0
        %871 = vmatpush2.msra.mxu0 0.0
        %872 = vmatprep.mubr.f32.mxu0 0.0
        %873 = vmatmul.mubr.f32.gmra.mxu0 %v604
        %v874 = vpop.f32.mrf.mxu0
        %v875 = vadd.f32 %v806, %v874
        %v876 = vpop.f32.mrf.mxu0
        %877 = vmatprep.mubr.f32.mxu0 0.0
        %878 = vmatmul.mubr.f32.gmra.mxu0 %v607
        %v879 = vpop.f32.mrf.mxu0
        %v880 = vadd.f32 %v806, %v879
        %v881 = vpop.f32.mrf.mxu0
        %882 = vmatprep.mubr.f32.mxu0 0.0
        %883 = vmatmul.mubr.f32.gmra.mxu0 %v610
        %v884 = vpop.f32.mrf.mxu0
        %v885 = vadd.f32 %v806, %v884
        %v886 = vpop.f32.mrf.mxu0
        %887 = vdwg.mxu0
        %888 = vst.msk [vmem:[#allocation5] sm:$0xff] %vm579, %v780
        %889 = vst.msk [vmem:[#allocation6] sm:$0xff] %vm579, %v875
        %891 = vrot.lane.b32.xlu0 %v785, 64
        %v892 = vpop.permute.xlu0 %891
        %vm894 = vcmask 1048064
        %895 = vst.msk [vmem:[#allocation5] sm:$0xff] %vm894, %v892
        %897 = vrot.lane.b32.xlu0 %v880, 64
        %v898 = vpop.permute.xlu0 %897
        %900 = vst.msk [vmem:[#allocation6] sm:$0xff] %vm894, %v898
        %901 = vst.msk [vmem:[#allocation5 + $0x8] sm:$0xff] %vm579, %v790
        %902 = vst.msk [vmem:[#allocation6 + $0x8] sm:$0xff] %vm579, %v885
        %v903 = vld [vmem:[%s13] sm:$0xff]
        %v904 = vld [vmem:[%s13 + $0x8] sm:$0xff]
        %v905 = vld [vmem:[%s13 + $0x10] sm:$0xff]
        %v906 = vld [vmem:[%s13 + $0x18] sm:$0xff]
        %v907 = vld [vmem:[%s13 + $0x20] sm:$0xff]
        %v908 = vld [vmem:[%s13 + $0x28] sm:$0xff]
        %v909 = vld [vmem:[%s13 + $0x30] sm:$0xff]
        %v910 = vld [vmem:[%s13 + $0x38] sm:$0xff]
        %v911 = vld [vmem:[%s13 + $0x40] sm:$0xff]
        %v912 = vld [vmem:[%s13 + $0x48] sm:$0xff]
        %v913 = vld [vmem:[%s13 + $0x50] sm:$0xff]
        %v914 = vld [vmem:[%s13 + $0x58] sm:$0xff]
        %v915 = vld [vmem:[%s13 + $0x60] sm:$0xff]
        %v916 = vld [vmem:[%s13 + $0x68] sm:$0xff]
        %v917 = vld [vmem:[%s13 + $0x70] sm:$0xff]
        %v918 = vld [vmem:[%s13 + $0x78] sm:$0xff]
        %v919 = vld [vmem:[%s13 + $0x80] sm:$0xff]
        %v920 = vld [vmem:[%s13 + $0x88] sm:$0xff]
        %v921 = vld [vmem:[%s13 + $0x90] sm:$0xff]
        %v922 = vld [vmem:[%s13 + $0x98] sm:$0xff]
        %v923 = vld [vmem:[%s13 + $0xa0] sm:$0xff]
        %v924 = vld [vmem:[%s13 + $0xa8] sm:$0xff]
        %v925 = vld [vmem:[%s13 + $0xb0] sm:$0xff]
        %v926 = vld [vmem:[%s13 + $0xb8] sm:$0xff]
        %v927 = vld [vmem:[%s14] sm:$0xff]
        %v928 = vld [vmem:[%s14 + $0x8] sm:$0xff]
        %v929 = vld [vmem:[%s14 + $0x10] sm:$0xff]
        %v930 = vld [vmem:[%s14 + $0x18] sm:$0xff]
        %v931 = vld [vmem:[%s14 + $0x20] sm:$0xff]
        %v932 = vld [vmem:[%s14 + $0x28] sm:$0xff]
        %v933 = vld [vmem:[#allocation3] sm:$0xff]
        %935 = vrot.lane.b32.xlu0 %v933, 64
        %v936 = vpop.permute.xlu0 %935
        %v938 = vsel %vm579, %v933, %v936
        %v939 = vld [vmem:[#allocation5] sm:$0xff]
        %v940 = vld [vmem:[#allocation5 + $0x8] sm:$0xff]
        %v941 = vmul.f32 %v938, %v939
        %v942 = vmul.f32 %v933, %v940
        %v944 = vsel %vm579, %v942, 0
        %946 = vmatprep.subr.mxu0 0.0
        %947 = vmatpush1.msra.mxu0 %v918
        %948 = vmatprep.subr.mxu0 0.0
        %949 = vmatpush1.msra.mxu0 %v917
        %950 = vmatprep.subr.mxu0 0.0
        %951 = vmatpush1.msra.mxu0 %v916
        %952 = vmatprep.subr.mxu0 0.0
        %953 = vmatpush1.msra.mxu0 %v915
        %954 = vmatprep.subr.mxu0 0.0
        %955 = vmatpush1.msra.mxu0 %v914
        %956 = vmatprep.subr.mxu0 0.0
        %957 = vmatpush1.msra.mxu0 %v913
        %958 = vmatprep.subr.mxu0 0.0
        %959 = vmatpush1.msra.mxu0 %v912
        %960 = vmatprep.subr.mxu0 0.0
        %961 = vmatpush1.msra.mxu0 %v911
        %962 = vmatprep.subr.mxu0 0.0
        %963 = vmatpush1.msra.mxu0 %v910
        %964 = vmatprep.subr.mxu0 0.0
        %965 = vmatpush1.msra.mxu0 %v909
        %966 = vmatprep.subr.mxu0 0.0
        %967 = vmatpush1.msra.mxu0 %v908
        %968 = vmatprep.subr.mxu0 0.0
        %969 = vmatpush1.msra.mxu0 %v907
        %970 = vmatprep.subr.mxu0 0.0
        %971 = vmatpush1.msra.mxu0 %v906
        %972 = vmatprep.subr.mxu0 0.0
        %973 = vmatpush1.msra.mxu0 %v905
        %974 = vmatprep.subr.mxu0 0.0
        %975 = vmatpush1.msra.mxu0 %v904
        %976 = vmatprep.subr.mxu0 0.0
        %977 = vmatpush1.msra.mxu0 %v903
        %978 = vmatprep.subr.mxu0 0.0
        %979 = vmatpush2.msra.mxu0 0.0
        %980 = vmatprep.subr.mxu0 0.0
        %981 = vmatpush2.msra.mxu0 0.0
        %982 = vmatprep.subr.mxu0 0.0
        %983 = vmatpush2.msra.mxu0 0.0
        %984 = vmatprep.subr.mxu0 0.0
        %985 = vmatpush2.msra.mxu0 0.0
        %986 = vmatprep.subr.mxu0 0.0
        %987 = vmatpush2.msra.mxu0 0.0
        %988 = vmatprep.subr.mxu0 0.0
        %989 = vmatpush2.msra.mxu0 0.0
        %990 = vmatprep.subr.mxu0 0.0
        %991 = vmatpush2.msra.mxu0 0.0
        %992 = vmatprep.subr.mxu0 0.0
        %993 = vmatpush2.msra.mxu0 0.0
        %994 = vmatprep.subr.mxu0 0.0
        %995 = vmatpush2.msra.mxu0 %v926
        %996 = vmatprep.subr.mxu0 0.0
        %997 = vmatpush2.msra.mxu0 %v925
        %998 = vmatprep.subr.mxu0 0.0
        %999 = vmatpush2.msra.mxu0 %v924
        %1000 = vmatprep.subr.mxu0 0.0
        %1001 = vmatpush2.msra.mxu0 %v923
        %1002 = vmatprep.subr.mxu0 0.0
        %1003 = vmatpush2.msra.mxu0 %v922
        %1004 = vmatprep.subr.mxu0 0.0
        %1005 = vmatpush2.msra.mxu0 %v921
        %1006 = vmatprep.subr.mxu0 0.0
        %1007 = vmatpush2.msra.mxu0 %v920
        %1008 = vmatprep.subr.mxu0 0.0
        %1009 = vmatpush2.msra.mxu0 %v919
        %1010 = vmatprep.mubr.f32.mxu0 %v944
        %1011 = vmatmul.mubr.f32.gmra.mxu0 %v941
        %v1012 = vpop.f32.mrf.mxu0
        %v1013 = vadd.f32 0.0, %v1012
        %v1014 = vpop.f32.mrf.mxu0
        %1015 = vdwg.mxu0
        %1017 = vrot.lane.b32.xlu0 %v1013, 120
        %v1018 = vpop.permute.xlu0 %1017
        %v1020 = vmax.f32 %v1013, %v1018
        %1021 = vrot.lane.b32.xlu0 %v1013, 112
        %v1022 = vpop.permute.xlu0 %1021
        %v1024 = vmax.f32 %v1020, %v1022
        %1026 = vrot.lane.b32.xlu0 %v1024, 8
        %v1027 = vpop.permute.xlu0 %1026
        %1029 = vrot.lane.b32.xlu0 %v1024, 16
        %v1030 = vpop.permute.xlu0 %1029
        %vm1032 = vcmask 64512
        %v1033 = vsel %vm1032, %v1024, %v1027
        %vm1034 = vcmask 130048
        %v1035 = vsel %vm1034, %v1033, %v1030
        %v1036 = vsub.f32 %v1013, %v1035
        %v1037 = vmul.f32 %v1036, 1.442695
        %v1038 = vpow.pop %v1037
        %1040 = vrot.lane.b32.xlu0 %v1038, 120
        %v1041 = vpop.permute.xlu0 %1040
        %v1043 = vadd.f32 %v1038, %v1041
        %1044 = vrot.lane.b32.xlu0 %v1038, 112
        %v1045 = vpop.permute.xlu0 %1044
        %v1047 = vadd.f32 %v1043, %v1045
        %v1048 = vrcp.pop %v1047
        %v1049 = vmul.f32 1.0, %v1048
        %1051 = vrot.lane.b32.xlu0 %v1049, 8
        %v1052 = vpop.permute.xlu0 %1051
        %1054 = vrot.lane.b32.xlu0 %v1049, 16
        %v1055 = vpop.permute.xlu0 %1054
        %v1057 = vsel %vm1032, %v1049, %v1052
        %v1058 = vsel %vm1034, %v1057, %v1055
        %v1059 = vmul.f32 %v1038, %v1058
        %vm1060 = vcmask 195584
        %v1062 = vsel %vm1060, %v1059, 0
        %1064 = vmatprep.subr.mxu0 0.0
        %1065 = vmatpush1.msra.mxu0 0.0
        %1066 = vmatprep.subr.mxu0 0.0
        %1067 = vmatpush1.msra.mxu0 0.0
        %1068 = vmatprep.subr.mxu0 0.0
        %1069 = vmatpush1.msra.mxu0 0.0
        %1070 = vmatprep.subr.mxu0 0.0
        %1071 = vmatpush1.msra.mxu0 0.0
        %1072 = vmatprep.subr.mxu0 0.0
        %1073 = vmatpush1.msra.mxu0 0.0
        %1074 = vmatprep.subr.mxu0 0.0
        %1075 = vmatpush1.msra.mxu0 0.0
        %1076 = vmatprep.subr.mxu0 0.0
        %1077 = vmatpush1.msra.mxu0 0.0
        %1078 = vmatprep.subr.mxu0 0.0
        %1079 = vmatpush1.msra.mxu0 0.0
        %1080 = vmatprep.subr.mxu0 0.0
        %1081 = vmatpush1.msra.mxu0 0.0
        %1082 = vmatprep.subr.mxu0 0.0
        %1083 = vmatpush1.msra.mxu0 0.0
        %1084 = vmatprep.subr.mxu0 0.0
        %1085 = vmatpush1.msra.mxu0 0.0
        %1086 = vmatprep.subr.mxu0 0.0
        %1087 = vmatpush1.msra.mxu0 0.0
        %1088 = vmatprep.subr.mxu0 0.0
        %1089 = vmatpush1.msra.mxu0 0.0
        %1090 = vmatprep.subr.mxu0 %v932
        %1091 = vmatpush1.msra.mxu0 %v931
        %1092 = vmatprep.subr.mxu0 %v930
        %1093 = vmatpush1.msra.mxu0 %v929
        %1094 = vmatprep.subr.mxu0 %v928
        %1095 = vmatpush1.msra.mxu0 %v927
        %1096 = vmatprep.subr.mxu0 0.0
        %1097 = vmatpush2.msra.mxu0 0.0
        %1098 = vmatprep.subr.mxu0 0.0
        %1099 = vmatpush2.msra.mxu0 0.0
        %1100 = vmatprep.subr.mxu0 0.0
        %1101 = vmatpush2.msra.mxu0 0.0
        %1102 = vmatprep.subr.mxu0 0.0
        %1103 = vmatpush2.msra.mxu0 0.0
        %1104 = vmatprep.subr.mxu0 0.0
        %1105 = vmatpush2.msra.mxu0 0.0
        %1106 = vmatprep.subr.mxu0 0.0
        %1107 = vmatpush2.msra.mxu0 0.0
        %1108 = vmatprep.subr.mxu0 0.0
        %1109 = vmatpush2.msra.mxu0 0.0
        %1110 = vmatprep.subr.mxu0 0.0
        %1111 = vmatpush2.msra.mxu0 0.0
        %1112 = vmatprep.subr.mxu0 0.0
        %1113 = vmatpush2.msra.mxu0 0.0
        %1114 = vmatprep.subr.mxu0 0.0
        %1115 = vmatpush2.msra.mxu0 0.0
        %1116 = vmatprep.subr.mxu0 0.0
        %1117 = vmatpush2.msra.mxu0 0.0
        %1118 = vmatprep.subr.mxu0 0.0
        %1119 = vmatpush2.msra.mxu0 0.0
        %1120 = vmatprep.subr.mxu0 0.0
        %1121 = vmatpush2.msra.mxu0 0.0
        %1122 = vmatprep.subr.mxu0 0.0
        %1123 = vmatpush2.msra.mxu0 0.0
        %1124 = vmatprep.subr.mxu0 0.0
        %1125 = vmatpush2.msra.mxu0 0.0
        %1126 = vmatprep.subr.mxu0 0.0
        %1127 = vmatpush2.msra.mxu0 0.0
        %1128 = vmatprep.mubr.f32.mxu0 0.0
        %1129 = vmatmul.mubr.f32.gmra.mxu0 %v1062
        %v1130 = vpop.f32.mrf.mxu0
        %v1131 = vadd.f32 0.0, %v1130
        %v1132 = vpop.f32.mrf.mxu0
        %v1133 = vadd.f32 0.0, %v1132
        %1134 = vdwg.mxu0
        %v1135 = vld [vmem:[#allocation6] sm:$0xff]
        %v1136 = vld [vmem:[#allocation6 + $0x8] sm:$0xff]
        %v1137 = vmul.f32 %v1131, %v1135
        %v1138 = vmul.f32 %v1133, %v1136
        %1140 = vrot.lane.b32.xlu0 %v1137, 64
        %v1141 = vpop.permute.xlu0 %1140
        %v1143 = vadd.f32 %v1137, %v1141
        %v1144 = vadd.f32 %v1143, %v1138
        %1145 = vst.msk [vmem:[#allocation4] sm:$0xff] %vm579, %v1144
        %v1146 = vld [vmem:[#allocation3 + $0x8] sm:$0xff]
        %1148 = vrot.lane.b32.xlu0 %v1146, 64
        %v1149 = vpop.permute.xlu0 %1148
        %v1151 = vsel %vm579, %v1146, %v1149
        %v1152 = vld [vmem:[#allocation5] sm:$0xff]
        %v1153 = vld [vmem:[#allocation5 + $0x8] sm:$0xff]
        %v1154 = vmul.f32 %v1151, %v1152
        %v1155 = vmul.f32 %v1146, %v1153
        %v1157 = vsel %vm579, %v1155, 0
        %1159 = vmatprep.subr.mxu0 0.0
        %1160 = vmatpush1.msra.mxu0 %v918
        %1161 = vmatprep.subr.mxu0 0.0
        %1162 = vmatpush1.msra.mxu0 %v917
        %1163 = vmatprep.subr.mxu0 0.0
        %1164 = vmatpush1.msra.mxu0 %v916
        %1165 = vmatprep.subr.mxu0 0.0
        %1166 = vmatpush1.msra.mxu0 %v915
        %1167 = vmatprep.subr.mxu0 0.0
        %1168 = vmatpush1.msra.mxu0 %v914
        %1169 = vmatprep.subr.mxu0 0.0
        %1170 = vmatpush1.msra.mxu0 %v913
        %1171 = vmatprep.subr.mxu0 0.0
        %1172 = vmatpush1.msra.mxu0 %v912
        %1173 = vmatprep.subr.mxu0 0.0
        %1174 = vmatpush1.msra.mxu0 %v911
        %1175 = vmatprep.subr.mxu0 0.0
        %1176 = vmatpush1.msra.mxu0 %v910
        %1177 = vmatprep.subr.mxu0 0.0
        %1178 = vmatpush1.msra.mxu0 %v909
        %1179 = vmatprep.subr.mxu0 0.0
        %1180 = vmatpush1.msra.mxu0 %v908
        %1181 = vmatprep.subr.mxu0 0.0
        %1182 = vmatpush1.msra.mxu0 %v907
        %1183 = vmatprep.subr.mxu0 0.0
        %1184 = vmatpush1.msra.mxu0 %v906
        %1185 = vmatprep.subr.mxu0 0.0
        %1186 = vmatpush1.msra.mxu0 %v905
        %1187 = vmatprep.subr.mxu0 0.0
        %1188 = vmatpush1.msra.mxu0 %v904
        %1189 = vmatprep.subr.mxu0 0.0
        %1190 = vmatpush1.msra.mxu0 %v903
        %1191 = vmatprep.subr.mxu0 0.0
        %1192 = vmatpush2.msra.mxu0 0.0
        %1193 = vmatprep.subr.mxu0 0.0
        %1194 = vmatpush2.msra.mxu0 0.0
        %1195 = vmatprep.subr.mxu0 0.0
        %1196 = vmatpush2.msra.mxu0 0.0
        %1197 = vmatprep.subr.mxu0 0.0
        %1198 = vmatpush2.msra.mxu0 0.0
        %1199 = vmatprep.subr.mxu0 0.0
        %1200 = vmatpush2.msra.mxu0 0.0
        %1201 = vmatprep.subr.mxu0 0.0
        %1202 = vmatpush2.msra.mxu0 0.0
        %1203 = vmatprep.subr.mxu0 0.0
        %1204 = vmatpush2.msra.mxu0 0.0
        %1205 = vmatprep.subr.mxu0 0.0
        %1206 = vmatpush2.msra.mxu0 0.0
        %1207 = vmatprep.subr.mxu0 0.0
        %1208 = vmatpush2.msra.mxu0 %v926
        %1209 = vmatprep.subr.mxu0 0.0
        %1210 = vmatpush2.msra.mxu0 %v925
        %1211 = vmatprep.subr.mxu0 0.0
        %1212 = vmatpush2.msra.mxu0 %v924
        %1213 = vmatprep.subr.mxu0 0.0
        %1214 = vmatpush2.msra.mxu0 %v923
        %1215 = vmatprep.subr.mxu0 0.0
        %1216 = vmatpush2.msra.mxu0 %v922
        %1217 = vmatprep.subr.mxu0 0.0
        %1218 = vmatpush2.msra.mxu0 %v921
        %1219 = vmatprep.subr.mxu0 0.0
        %1220 = vmatpush2.msra.mxu0 %v920
        %1221 = vmatprep.subr.mxu0 0.0
        %1222 = vmatpush2.msra.mxu0 %v919
        %1223 = vmatprep.mubr.f32.mxu0 %v1157
        %1224 = vmatmul.mubr.f32.gmra.mxu0 %v1154
        %v1225 = vpop.f32.mrf.mxu0
        %v1226 = vadd.f32 0.0, %v1225
        %v1227 = vpop.f32.mrf.mxu0
        %1228 = vdwg.mxu0
        %1230 = vrot.lane.b32.xlu0 %v1226, 120
        %v1231 = vpop.permute.xlu0 %1230
        %v1233 = vmax.f32 %v1226, %v1231
        %1234 = vrot.lane.b32.xlu0 %v1226, 112
        %v1235 = vpop.permute.xlu0 %1234
        %v1237 = vmax.f32 %v1233, %v1235
        %1239 = vrot.lane.b32.xlu0 %v1237, 8
        %v1240 = vpop.permute.xlu0 %1239
        %1242 = vrot.lane.b32.xlu0 %v1237, 16
        %v1243 = vpop.permute.xlu0 %1242
        %v1245 = vsel %vm1032, %v1237, %v1240
        %v1246 = vsel %vm1034, %v1245, %v1243
        %v1247 = vsub.f32 %v1226, %v1246
        %v1248 = vmul.f32 %v1247, 1.442695
        %v1249 = vpow.pop %v1248
        %1251 = vrot.lane.b32.xlu0 %v1249, 120
        %v1252 = vpop.permute.xlu0 %1251
        %v1254 = vadd.f32 %v1249, %v1252
        %1255 = vrot.lane.b32.xlu0 %v1249, 112
        %v1256 = vpop.permute.xlu0 %1255
        %v1258 = vadd.f32 %v1254, %v1256
        %v1259 = vrcp.pop %v1258
        %v1260 = vmul.f32 1.0, %v1259
        %1262 = vrot.lane.b32.xlu0 %v1260, 8
        %v1263 = vpop.permute.xlu0 %1262
        %1265 = vrot.lane.b32.xlu0 %v1260, 16
        %v1266 = vpop.permute.xlu0 %1265
        %v1268 = vsel %vm1032, %v1260, %v1263
        %v1269 = vsel %vm1034, %v1268, %v1266
        %v1270 = vmul.f32 %v1249, %v1269
        %v1272 = vsel %vm1060, %v1270, 0
        %1274 = vmatprep.subr.mxu0 0.0
        %1275 = vmatpush1.msra.mxu0 0.0
        %1276 = vmatprep.subr.mxu0 0.0
        %1277 = vmatpush1.msra.mxu0 0.0
        %1278 = vmatprep.subr.mxu0 0.0
        %1279 = vmatpush1.msra.mxu0 0.0
        %1280 = vmatprep.subr.mxu0 0.0
        %1281 = vmatpush1.msra.mxu0 0.0
        %1282 = vmatprep.subr.mxu0 0.0
        %1283 = vmatpush1.msra.mxu0 0.0
        %1284 = vmatprep.subr.mxu0 0.0
        %1285 = vmatpush1.msra.mxu0 0.0
        %1286 = vmatprep.subr.mxu0 0.0
        %1287 = vmatpush1.msra.mxu0 0.0
        %1288 = vmatprep.subr.mxu0 0.0
        %1289 = vmatpush1.msra.mxu0 0.0
        %1290 = vmatprep.subr.mxu0 0.0
        %1291 = vmatpush1.msra.mxu0 0.0
        %1292 = vmatprep.subr.mxu0 0.0
        %1293 = vmatpush1.msra.mxu0 0.0
        %1294 = vmatprep.subr.mxu0 0.0
        %1295 = vmatpush1.msra.mxu0 0.0
        %1296 = vmatprep.subr.mxu0 0.0
        %1297 = vmatpush1.msra.mxu0 0.0
        %1298 = vmatprep.subr.mxu0 0.0
        %1299 = vmatpush1.msra.mxu0 0.0
        %1300 = vmatprep.subr.mxu0 %v932
        %1301 = vmatpush1.msra.mxu0 %v931
        %1302 = vmatprep.subr.mxu0 %v930
        %1303 = vmatpush1.msra.mxu0 %v929
        %1304 = vmatprep.subr.mxu0 %v928
        %1305 = vmatpush1.msra.mxu0 %v927
        %1306 = vmatprep.subr.mxu0 0.0
        %1307 = vmatpush2.msra.mxu0 0.0
        %1308 = vmatprep.subr.mxu0 0.0
        %1309 = vmatpush2.msra.mxu0 0.0
        %1310 = vmatprep.subr.mxu0 0.0
        %1311 = vmatpush2.msra.mxu0 0.0
        %1312 = vmatprep.subr.mxu0 0.0
        %1313 = vmatpush2.msra.mxu0 0.0
        %1314 = vmatprep.subr.mxu0 0.0
        %1315 = vmatpush2.msra.mxu0 0.0
        %1316 = vmatprep.subr.mxu0 0.0
        %1317 = vmatpush2.msra.mxu0 0.0
        %1318 = vmatprep.subr.mxu0 0.0
        %1319 = vmatpush2.msra.mxu0 0.0
        %1320 = vmatprep.subr.mxu0 0.0
        %1321 = vmatpush2.msra.mxu0 0.0
        %1322 = vmatprep.subr.mxu0 0.0
        %1323 = vmatpush2.msra.mxu0 0.0
        %1324 = vmatprep.subr.mxu0 0.0
        %1325 = vmatpush2.msra.mxu0 0.0
        %1326 = vmatprep.subr.mxu0 0.0
        %1327 = vmatpush2.msra.mxu0 0.0
        %1328 = vmatprep.subr.mxu0 0.0
        %1329 = vmatpush2.msra.mxu0 0.0
        %1330 = vmatprep.subr.mxu0 0.0
        %1331 = vmatpush2.msra.mxu0 0.0
        %1332 = vmatprep.subr.mxu0 0.0
        %1333 = vmatpush2.msra.mxu0 0.0
        %1334 = vmatprep.subr.mxu0 0.0
        %1335 = vmatpush2.msra.mxu0 0.0
        %1336 = vmatprep.subr.mxu0 0.0
        %1337 = vmatpush2.msra.mxu0 0.0
        %1338 = vmatprep.mubr.f32.mxu0 0.0
        %1339 = vmatmul.mubr.f32.gmra.mxu0 %v1272
        %v1340 = vpop.f32.mrf.mxu0
        %v1341 = vadd.f32 0.0, %v1340
        %v1342 = vpop.f32.mrf.mxu0
        %v1343 = vadd.f32 0.0, %v1342
        %1344 = vdwg.mxu0
        %v1345 = vld [vmem:[#allocation6] sm:$0xff]
        %v1346 = vld [vmem:[#allocation6 + $0x8] sm:$0xff]
        %v1347 = vmul.f32 %v1341, %v1345
        %v1348 = vmul.f32 %v1343, %v1346
        %1350 = vrot.lane.b32.xlu0 %v1347, 64
        %v1351 = vpop.permute.xlu0 %1350
        %v1353 = vadd.f32 %v1347, %v1351
        %v1354 = vadd.f32 %v1353, %v1348
        %1355 = vst.msk [vmem:[#allocation4 + $0x8] sm:$0xff] %vm579, %v1354
        %v1356 = vld [vmem:[#allocation3 + $0x10] sm:$0xff]
        %1358 = vrot.lane.b32.xlu0 %v1356, 64
        %v1359 = vpop.permute.xlu0 %1358
        %v1361 = vsel %vm579, %v1356, %v1359
        %v1362 = vld [vmem:[#allocation5] sm:$0xff]
        %v1363 = vld [vmem:[#allocation5 + $0x8] sm:$0xff]
        %v1364 = vmul.f32 %v1361, %v1362
        %v1365 = vmul.f32 %v1356, %v1363
        %v1367 = vsel %vm579, %v1365, 0
        %1369 = vmatprep.subr.mxu0 0.0
        %1370 = vmatpush1.msra.mxu0 %v918
        %1371 = vmatprep.subr.mxu0 0.0
        %1372 = vmatpush1.msra.mxu0 %v917
        %1373 = vmatprep.subr.mxu0 0.0
        %1374 = vmatpush1.msra.mxu0 %v916
        %1375 = vmatprep.subr.mxu0 0.0
        %1376 = vmatpush1.msra.mxu0 %v915
        %1377 = vmatprep.subr.mxu0 0.0
        %1378 = vmatpush1.msra.mxu0 %v914
        %1379 = vmatprep.subr.mxu0 0.0
        %1380 = vmatpush1.msra.mxu0 %v913
        %1381 = vmatprep.subr.mxu0 0.0
        %1382 = vmatpush1.msra.mxu0 %v912
        %1383 = vmatprep.subr.mxu0 0.0
        %1384 = vmatpush1.msra.mxu0 %v911
        %1385 = vmatprep.subr.mxu0 0.0
        %1386 = vmatpush1.msra.mxu0 %v910
        %1387 = vmatprep.subr.mxu0 0.0
        %1388 = vmatpush1.msra.mxu0 %v909
        %1389 = vmatprep.subr.mxu0 0.0
        %1390 = vmatpush1.msra.mxu0 %v908
        %1391 = vmatprep.subr.mxu0 0.0
        %1392 = vmatpush1.msra.mxu0 %v907
        %1393 = vmatprep.subr.mxu0 0.0
        %1394 = vmatpush1.msra.mxu0 %v906
        %1395 = vmatprep.subr.mxu0 0.0
        %1396 = vmatpush1.msra.mxu0 %v905
        %1397 = vmatprep.subr.mxu0 0.0
        %1398 = vmatpush1.msra.mxu0 %v904
        %1399 = vmatprep.subr.mxu0 0.0
        %1400 = vmatpush1.msra.mxu0 %v903
        %1401 = vmatprep.subr.mxu0 0.0
        %1402 = vmatpush2.msra.mxu0 0.0
        %1403 = vmatprep.subr.mxu0 0.0
        %1404 = vmatpush2.msra.mxu0 0.0
        %1405 = vmatprep.subr.mxu0 0.0
        %1406 = vmatpush2.msra.mxu0 0.0
        %1407 = vmatprep.subr.mxu0 0.0
        %1408 = vmatpush2.msra.mxu0 0.0
        %1409 = vmatprep.subr.mxu0 0.0
        %1410 = vmatpush2.msra.mxu0 0.0
        %1411 = vmatprep.subr.mxu0 0.0
        %1412 = vmatpush2.msra.mxu0 0.0
        %1413 = vmatprep.subr.mxu0 0.0
        %1414 = vmatpush2.msra.mxu0 0.0
        %1415 = vmatprep.subr.mxu0 0.0
        %1416 = vmatpush2.msra.mxu0 0.0
        %1417 = vmatprep.subr.mxu0 0.0
        %1418 = vmatpush2.msra.mxu0 %v926
        %1419 = vmatprep.subr.mxu0 0.0
        %1420 = vmatpush2.msra.mxu0 %v925
        %1421 = vmatprep.subr.mxu0 0.0
        %1422 = vmatpush2.msra.mxu0 %v924
        %1423 = vmatprep.subr.mxu0 0.0
        %1424 = vmatpush2.msra.mxu0 %v923
        %1425 = vmatprep.subr.mxu0 0.0
        %1426 = vmatpush2.msra.mxu0 %v922
        %1427 = vmatprep.subr.mxu0 0.0
        %1428 = vmatpush2.msra.mxu0 %v921
        %1429 = vmatprep.subr.mxu0 0.0
        %1430 = vmatpush2.msra.mxu0 %v920
        %1431 = vmatprep.subr.mxu0 0.0
        %1432 = vmatpush2.msra.mxu0 %v919
        %1433 = vmatprep.mubr.f32.mxu0 %v1367
        %1434 = vmatmul.mubr.f32.gmra.mxu0 %v1364
        %v1435 = vpop.f32.mrf.mxu0
        %v1436 = vadd.f32 0.0, %v1435
        %v1437 = vpop.f32.mrf.mxu0
        %1438 = vdwg.mxu0
        %1440 = vrot.lane.b32.xlu0 %v1436, 120
        %v1441 = vpop.permute.xlu0 %1440
        %v1443 = vmax.f32 %v1436, %v1441
        %1444 = vrot.lane.b32.xlu0 %v1436, 112
        %v1445 = vpop.permute.xlu0 %1444
        %v1447 = vmax.f32 %v1443, %v1445
        %1449 = vrot.lane.b32.xlu0 %v1447, 8
        %v1450 = vpop.permute.xlu0 %1449
        %1452 = vrot.lane.b32.xlu0 %v1447, 16
        %v1453 = vpop.permute.xlu0 %1452
        %v1455 = vsel %vm1032, %v1447, %v1450
        %v1456 = vsel %vm1034, %v1455, %v1453
        %v1457 = vsub.f32 %v1436, %v1456
        %v1458 = vmul.f32 %v1457, 1.442695
        %v1459 = vpow.pop %v1458
        %1461 = vrot.lane.b32.xlu0 %v1459, 120
        %v1462 = vpop.permute.xlu0 %1461
        %v1464 = vadd.f32 %v1459, %v1462
        %1465 = vrot.lane.b32.xlu0 %v1459, 112
        %v1466 = vpop.permute.xlu0 %1465
        %v1468 = vadd.f32 %v1464, %v1466
        %v1469 = vrcp.pop %v1468
        %v1470 = vmul.f32 1.0, %v1469
        %1472 = vrot.lane.b32.xlu0 %v1470, 8
        %v1473 = vpop.permute.xlu0 %1472
        %1475 = vrot.lane.b32.xlu0 %v1470, 16
        %v1476 = vpop.permute.xlu0 %1475
        %v1478 = vsel %vm1032, %v1470, %v1473
        %v1479 = vsel %vm1034, %v1478, %v1476
        %v1480 = vmul.f32 %v1459, %v1479
        %v1482 = vsel %vm1060, %v1480, 0
        %1484 = vmatprep.subr.mxu0 0.0
        %1485 = vmatpush1.msra.mxu0 0.0
        %1486 = vmatprep.subr.mxu0 0.0
        %1487 = vmatpush1.msra.mxu0 0.0
        %1488 = vmatprep.subr.mxu0 0.0
        %1489 = vmatpush1.msra.mxu0 0.0
        %1490 = vmatprep.subr.mxu0 0.0
        %1491 = vmatpush1.msra.mxu0 0.0
        %1492 = vmatprep.subr.mxu0 0.0
        %1493 = vmatpush1.msra.mxu0 0.0
        %1494 = vmatprep.subr.mxu0 0.0
        %1495 = vmatpush1.msra.mxu0 0.0
        %1496 = vmatprep.subr.mxu0 0.0
        %1497 = vmatpush1.msra.mxu0 0.0
        %1498 = vmatprep.subr.mxu0 0.0
        %1499 = vmatpush1.msra.mxu0 0.0
        %1500 = vmatprep.subr.mxu0 0.0
        %1501 = vmatpush1.msra.mxu0 0.0
        %1502 = vmatprep.subr.mxu0 0.0
        %1503 = vmatpush1.msra.mxu0 0.0
        %1504 = vmatprep.subr.mxu0 0.0
        %1505 = vmatpush1.msra.mxu0 0.0
        %1506 = vmatprep.subr.mxu0 0.0
        %1507 = vmatpush1.msra.mxu0 0.0
        %1508 = vmatprep.subr.mxu0 0.0
        %1509 = vmatpush1.msra.mxu0 0.0
        %1510 = vmatprep.subr.mxu0 %v932
        %1511 = vmatpush1.msra.mxu0 %v931
        %1512 = vmatprep.subr.mxu0 %v930
        %1513 = vmatpush1.msra.mxu0 %v929
        %1514 = vmatprep.subr.mxu0 %v928
        %1515 = vmatpush1.msra.mxu0 %v927
        %1516 = vmatprep.subr.mxu0 0.0
        %1517 = vmatpush2.msra.mxu0 0.0
        %1518 = vmatprep.subr.mxu0 0.0
        %1519 = vmatpush2.msra.mxu0 0.0
        %1520 = vmatprep.subr.mxu0 0.0
        %1521 = vmatpush2.msra.mxu0 0.0
        %1522 = vmatprep.subr.mxu0 0.0
        %1523 = vmatpush2.msra.mxu0 0.0
        %1524 = vmatprep.subr.mxu0 0.0
        %1525 = vmatpush2.msra.mxu0 0.0
        %1526 = vmatprep.subr.mxu0 0.0
        %1527 = vmatpush2.msra.mxu0 0.0
        %1528 = vmatprep.subr.mxu0 0.0
        %1529 = vmatpush2.msra.mxu0 0.0
        %1530 = vmatprep.subr.mxu0 0.0
        %1531 = vmatpush2.msra.mxu0 0.0
        %1532 = vmatprep.subr.mxu0 0.0
        %1533 = vmatpush2.msra.mxu0 0.0
        %1534 = vmatprep.subr.mxu0 0.0
        %1535 = vmatpush2.msra.mxu0 0.0
        %1536 = vmatprep.subr.mxu0 0.0
        %1537 = vmatpush2.msra.mxu0 0.0
        %1538 = vmatprep.subr.mxu0 0.0
        %1539 = vmatpush2.msra.mxu0 0.0
        %1540 = vmatprep.subr.mxu0 0.0
        %1541 = vmatpush2.msra.mxu0 0.0
        %1542 = vmatprep.subr.mxu0 0.0
        %1543 = vmatpush2.msra.mxu0 0.0
        %1544 = vmatprep.subr.mxu0 0.0
        %1545 = vmatpush2.msra.mxu0 0.0
        %1546 = vmatprep.subr.mxu0 0.0
        %1547 = vmatpush2.msra.mxu0 0.0
        %1548 = vmatprep.mubr.f32.mxu0 0.0
        %1549 = vmatmul.mubr.f32.gmra.mxu0 %v1482
        %v1550 = vpop.f32.mrf.mxu0
        %v1551 = vadd.f32 0.0, %v1550
        %v1552 = vpop.f32.mrf.mxu0
        %v1553 = vadd.f32 0.0, %v1552
        %1554 = vdwg.mxu0
        %v1555 = vld [vmem:[#allocation6] sm:$0xff]
        %v1556 = vld [vmem:[#allocation6 + $0x8] sm:$0xff]
        %v1557 = vmul.f32 %v1551, %v1555
        %v1558 = vmul.f32 %v1553, %v1556
        %1560 = vrot.lane.b32.xlu0 %v1557, 64
        %v1561 = vpop.permute.xlu0 %1560
        %v1563 = vadd.f32 %v1557, %v1561
        %v1564 = vadd.f32 %v1563, %v1558
        %1565 = vst.msk [vmem:[#allocation4 + $0x10] sm:$0xff] %vm579, %v1564
        %v1566 = vld [vmem:[#allocation4] sm:$0xff]
        %v1567 = vld [vmem:[#allocation4 + $0x8] sm:$0xff]
        %v1568 = vld [vmem:[#allocation4 + $0x10] sm:$0xff]
        %v1569 = vld [vmem:[#allocation13] sm:$0xff]
        %v1570 = vld [vmem:[#allocation13 + $0x8] sm:$0xff]
        %v1571 = vld [vmem:[#allocation13 + $0x10] sm:$0xff]
        %v1572 = vld [vmem:[#allocation13 + $0x18] sm:$0xff]
        %v1573 = vld [vmem:[#allocation13 + $0x20] sm:$0xff]
        %v1574 = vld [vmem:[#allocation13 + $0x28] sm:$0xff]
        %v1575 = vld [vmem:[#allocation13 + $0x30] sm:$0xff]
        %v1576 = vld [vmem:[#allocation13 + $0x38] sm:$0xff]
        %v1577 = vld [vmem:[%s10] sm:$0x1]
        %v1579 = vlaneseq
        %v1580 = vshrl.u32 %v1579, 7
        %v1581 = vsub.s32 0, %v1580
        %v1582 = vrot.slane %v1577, %v1581
        %v1585 = vsel %vm579, %v1566, 0
        %v1588 = vsel %vm579, %v1567, 0
        %v1591 = vsel %vm579, %v1568, 0
        %1593 = vmatprep.subr.mxu0 0.0
        %1594 = vmatpush1.msra.mxu0 0.0
        %1595 = vmatprep.subr.mxu0 0.0
        %1596 = vmatpush1.msra.mxu0 0.0
        %1597 = vmatprep.subr.mxu0 0.0
        %1598 = vmatpush1.msra.mxu0 0.0
        %1599 = vmatprep.subr.mxu0 0.0
        %1600 = vmatpush1.msra.mxu0 0.0
        %1601 = vmatprep.subr.mxu0 0.0
        %1602 = vmatpush1.msra.mxu0 0.0
        %1603 = vmatprep.subr.mxu0 0.0
        %1604 = vmatpush1.msra.mxu0 0.0
        %1605 = vmatprep.subr.mxu0 0.0
        %1606 = vmatpush1.msra.mxu0 0.0
        %1607 = vmatprep.subr.mxu0 0.0
        %1608 = vmatpush1.msra.mxu0 0.0
        %1609 = vmatprep.subr.mxu0 0.0
        %1610 = vmatpush1.msra.mxu0 %v1576
        %1611 = vmatprep.subr.mxu0 0.0
        %1612 = vmatpush1.msra.mxu0 %v1575
        %1613 = vmatprep.subr.mxu0 0.0
        %1614 = vmatpush1.msra.mxu0 %v1574
        %1615 = vmatprep.subr.mxu0 0.0
        %1616 = vmatpush1.msra.mxu0 %v1573
        %1617 = vmatprep.subr.mxu0 0.0
        %1618 = vmatpush1.msra.mxu0 %v1572
        %1619 = vmatprep.subr.mxu0 0.0
        %1620 = vmatpush1.msra.mxu0 %v1571
        %1621 = vmatprep.subr.mxu0 0.0
        %1622 = vmatpush1.msra.mxu0 %v1570
        %1623 = vmatprep.subr.mxu0 0.0
        %1624 = vmatpush1.msra.mxu0 %v1569
        %1625 = vmatprep.subr.mxu0 0.0
        %1626 = vmatpush2.msra.mxu0 0.0
        %1627 = vmatprep.subr.mxu0 0.0
        %1628 = vmatpush2.msra.mxu0 0.0
        %1629 = vmatprep.subr.mxu0 0.0
        %1630 = vmatpush2.msra.mxu0 0.0
        %1631 = vmatprep.subr.mxu0 0.0
        %1632 = vmatpush2.msra.mxu0 0.0
        %1633 = vmatprep.subr.mxu0 0.0
        %1634 = vmatpush2.msra.mxu0 0.0
        %1635 = vmatprep.subr.mxu0 0.0
        %1636 = vmatpush2.msra.mxu0 0.0
        %1637 = vmatprep.subr.mxu0 0.0
        %1638 = vmatpush2.msra.mxu0 0.0
        %1639 = vmatprep.subr.mxu0 0.0
        %1640 = vmatpush2.msra.mxu0 0.0
        %1641 = vmatprep.subr.mxu0 0.0
        %1642 = vmatpush2.msra.mxu0 0.0
        %1643 = vmatprep.subr.mxu0 0.0
        %1644 = vmatpush2.msra.mxu0 0.0
        %1645 = vmatprep.subr.mxu0 0.0
        %1646 = vmatpush2.msra.mxu0 0.0
        %1647 = vmatprep.subr.mxu0 0.0
        %1648 = vmatpush2.msra.mxu0 0.0
        %1649 = vmatprep.subr.mxu0 0.0
        %1650 = vmatpush2.msra.mxu0 0.0
        %1651 = vmatprep.subr.mxu0 0.0
        %1652 = vmatpush2.msra.mxu0 0.0
        %1653 = vmatprep.subr.mxu0 0.0
        %1654 = vmatpush2.msra.mxu0 0.0
        %1655 = vmatprep.subr.mxu0 0.0
        %1656 = vmatpush2.msra.mxu0 0.0
        %1657 = vmatprep.mubr.f32.mxu0 0.0
        %1658 = vmatmul.mubr.f32.gmra.mxu0 %v1585
        %v1659 = vpop.f32.mrf.mxu0
        %v1660 = vadd.f32 %v1582, %v1659
        %v1661 = vpop.f32.mrf.mxu0
        %1662 = vmatprep.mubr.f32.mxu0 0.0
        %1663 = vmatmul.mubr.f32.gmra.mxu0 %v1588
        %v1664 = vpop.f32.mrf.mxu0
        %v1665 = vadd.f32 %v1582, %v1664
        %v1666 = vpop.f32.mrf.mxu0
        %1667 = vmatprep.mubr.f32.mxu0 0.0
        %1668 = vmatmul.mubr.f32.gmra.mxu0 %v1591
        %v1669 = vpop.f32.mrf.mxu0
        %v1670 = vadd.f32 %v1582, %v1669
        %v1671 = vpop.f32.mrf.mxu0
        %1672 = vdwg.mxu0
        %v1673 = vld [vmem:[#allocation2] sm:$0xff]
        %v1674 = vld [vmem:[#allocation2 + $0x8] sm:$0xff]
        %v1675 = vld [vmem:[#allocation2 + $0x10] sm:$0xff]
        %v1676 = vadd.f32 %v1673, %v1660
        %v1677 = vadd.f32 %v1674, %v1665
        %v1678 = vadd.f32 %v1675, %v1670
        %v1679 = vsel %vm579, %v1676, 0.0
        %1680 = vadd.xlane.f32.xlu0 %v1679
        %v1681 = vpop.xlane.xlu0 %1680
        %v1682 = vsel %vm579, %v1677, 0.0
        %1683 = vadd.xlane.f32.xlu0 %v1682
        %v1684 = vpop.xlane.xlu0 %1683
        %v1685 = vsel %vm579, %v1678, 0.0
        %1686 = vadd.xlane.f32.xlu0 %v1685
        %v1687 = vpop.xlane.xlu0 %1686
        %v1688 = vrcp.pop 64.0
        %v1689 = vmul.f32 %v1681, %v1688
        %v1690 = vmul.f32 %v1684, %v1688
        %v1691 = vmul.f32 %v1687, %v1688
        %v1692 = vsub.f32 %v1676, %v1689
        %v1693 = vsub.f32 %v1677, %v1690
        %v1694 = vsub.f32 %v1678, %v1691
        %v1695 = vmul.f32 %v1692, %v1692
        %v1696 = vmul.f32 %v1693, %v1693
        %v1697 = vmul.f32 %v1694, %v1694
        %v1698 = vsel %vm579, %v1695, 0.0
        %1699 = vadd.xlane.f32.xlu0 %v1698
        %v1700 = vpop.xlane.xlu0 %1699
        %v1701 = vsel %vm579, %v1696, 0.0
        %1702 = vadd.xlane.f32.xlu0 %v1701
        %v1703 = vpop.xlane.xlu0 %1702
        %v1704 = vsel %vm579, %v1697, 0.0
        %1705 = vadd.xlane.f32.xlu0 %v1704
        %v1706 = vpop.xlane.xlu0 %1705
        %v1707 = vmul.f32 %v1700, %v1688
        %v1708 = vmul.f32 %v1703, %v1688
        %v1709 = vmul.f32 %v1706, %v1688
        %v1710 = vadd.f32 %v1707, 1e-05
        %v1711 = vadd.f32 %v1708, 1e-05
        %v1712 = vadd.f32 %v1709, 1e-05
        %v1713 = vrsqrt.pop %v1710
        %v1714 = vrsqrt.pop %v1711
        %v1715 = vrsqrt.pop %v1712
        %v1716 = vmul.f32 %v1692, %v1713
        %v1717 = vmul.f32 %v1693, %v1714
        %v1718 = vmul.f32 %v1694, %v1715
        %v1719 = vld [vmem:[%s11] sm:$0x1]
        %v1721 = vlaneseq
        %v1722 = vshrl.u32 %v1721, 7
        %v1723 = vsub.s32 0, %v1722
        %v1724 = vrot.slane %v1719, %v1723
        %v1726 = vmul.f32 %v1716, %v1724
        %v1727 = vmul.f32 %v1717, %v1724
        %v1728 = vmul.f32 %v1718, %v1724
        %v1729 = vld [vmem:[%s12] sm:$0x1]
        %v1731 = vlaneseq
        %v1732 = vshrl.u32 %v1731, 7
        %v1733 = vsub.s32 0, %v1732
        %v1734 = vrot.slane %v1729, %v1733
        %v1736 = vadd.f32 %v1726, %v1734
        %v1737 = vadd.f32 %v1727, %v1734
        %v1738 = vadd.f32 %v1728, %v1734
        %1739 = vst.msk [vmem:[%s571] sm:$0xff] %vm579, %v1736
        %1741 = vrot.lane.b32.xlu0 %v1737, 64
        %v1742 = vpop.permute.xlu0 %1741
        %1744 = vst.msk [vmem:[%s571] sm:$0xff] %vm894, %v1742
        %1745 = vst.msk [vmem:[%s571 + $0x8] sm:$0xff] %vm579, %v1738
        %s1746 = sand.u32 %s367, 1
        %s1747 = scalar_lea.sflag [#allocation9], %s1746
        %s1748 = sand.u32 %s367, 1
        %s1749 = smul.addr %s1748, 16
        %s1750 = scalar_lea.vmem [#allocation15], %s1749
        // Predicated region
        $region97: #{tpu_custom_call.1} parent=79 // pred_check
          %p1751 = pneg %p377
        $region98: #{tpu_custom_call.1} parent=79 // pred_check_branch
          %1753 = sbr.rel (%p1751) target = $region100
        $region99: #{tpu_custom_call.1} parent=79 // pred_region
          %s1755 = ssub.s32 256, 256
          %1756 = vsyncadd %s1747, %s1755
          %s1757 = smul.addr %s34, 2
          %s1758 = smul.addr %s1757, 128
          %s1759 = scalar_lea.hbm %s15, %s1758
          %s1761 = sshll.u32 %s1750, 4
          %s1762 = int_to_ptr.vmem [resolvable:$true] %s1761
          %1764 = dma.vmem_to_hbm [thread:$0]  %s1762, 256, %s1759, %s1747
        $region100: #{tpu_custom_call.1} parent=79 // pred_fallthru
          _
      $region80: #{tpu_custom_call.1} parent=5 // pred_fallthru
        _
      %p1765 = scmp.le.s32.totalorder 2, %s29
      // Predicated region
      $region101: #{tpu_custom_call.1} parent=5 // pred_check
        %p1766 = pneg %p1765
      $region102: #{tpu_custom_call.1} parent=5 // pred_check_branch
        %1768 = sbr.rel (%p1766) target = $region104
      $region103: #{tpu_custom_call.1} parent=5 // pred_region
        %s1769 = ssub.s32 %s29, 2
        // Predicated region
        $region105: #{tpu_custom_call.1} parent=103 // pred_check
          %p1770 = pneg %p383
        $region106: #{tpu_custom_call.1} parent=103 // pred_check_branch
          %1772 = sbr.rel (%p1770) target = $region108
        $region107: #{tpu_custom_call.1} parent=103 // pred_region
          %s1773 = sand.u32 %s368, 1
          %s1774 = scalar_lea.sflag [#allocation9], %s1773
          %s1775 = sand.u32 %s368, 1
          %s1776 = smul.addr %s1775, 16
          %s1777 = scalar_lea.vmem [#allocation15], %s1776
          %1778 = dma.done %s1774, 256
        $region108: #{tpu_custom_call.1} parent=103 // pred_fallthru
          _
      $region104: #{tpu_custom_call.1} parent=5 // pred_fallthru
        _
    $region6: #{tpu_custom_call.1} parent=1 // loop_footer
      %s33 = sadd.s32 1, %s29
    $region7: #{tpu_custom_call.1} parent=1 // loop_footer_branch
      %28 = sbr.rel target = $region3
    $region8: #{tpu_custom_call.1} parent=1 // loop_exit
      _
    %1779 = vsyncpa [#allocation8], 1
    %s1780 = scalar_lea.sflag [#allocation8], 1
    %1781 = vsyncpa %s1780, 1
    %1782 = vsyncpa [#allocation11], 1
    %s1783 = scalar_lea.sflag [#allocation11], 1
    %1784 = vsyncpa %s1783, 1
    %1785 = vsyncpa [#allocation14], 1
    %1786 = vsyncpa [#allocation9], 1
    %s1787 = scalar_lea.sflag [#allocation9], 1
    %1788 = vsyncpa %s1787, 1

</llo_original>
